<compile_context>
chip_gen: v6e
topology: v6e:2x2x1
jax: 0.10.0
libtpu: 0.0.40
codegen_flags: <defaults>
</compile_context>

<pallas_src>
import functools

import numpy as np

import jax
import jax.numpy as jnp
from jax.experimental import pallas as pl
from jax.experimental.pallas import tpu as pltpu


_GELU_C = 0.7978845608028654  # sqrt(2/pi)


def _gelu_tanh(x):
    # TODO(synk): torch F.gelu defaults to the exact erf formulation; erf has no
    # guaranteed Mosaic lowering, so the tanh approximation (max abs dev ~3e-3)
    # is used here and in the in-script reference.
    return 0.5 * x * (1.0 + jnp.tanh(_GELU_C * (x + 0.044715 * x * x * x)))


def _adaptive_convnext1d_kernel(
    x_ref,      # (C, tile_t)  input tile (also the residual, lane-aligned)
    halo_ref,   # (C, 2*pad)   reflect halo columns for this tile [left | right]
    p_ref,      # (E, tile_t)  condition tile
    w_dw_ref,   # (C, K)       depthwise conv weight
    b_dw_ref,   # (C, 1)
    w_ss_ref,   # (2C, E)      fused [scale; shift] 1x1 conv weight
    b_ss_ref,   # (2C, 1)
    w1_ref,     # (H, C)       pw_conv1
    b1_ref,     # (H, 1)
    w2_ref,     # (C, H)       pw_conv2 with layer-scale gamma folded in
    b2_ref,     # (C, 1)       pw_conv2 bias with gamma folded in
    o_ref,      # (C, tile_t)
    *, eps, kernel_size, tile_t):
    pad = kernel_size // 2
    C = o_ref.shape[0]

    x = x_ref[...].astype(jnp.float32)
    halo = halo_ref[...].astype(jnp.float32)
    # Halo'd window for the depthwise conv: (C, tile_t + 2*pad).
    xw = jnp.concatenate([halo[:, :pad], x, halo[:, pad:]], axis=1)

    # Fused scale/shift 1x1 convs as one MXU matmul (keeps the VALU slot free).
    ss = jnp.dot(w_ss_ref[...], p_ref[...].astype(jnp.float32),
                 preferred_element_type=jnp.float32) + b_ss_ref[...]   # (2C, tile_t)
    scale = ss[:C, :]
    shift = ss[C:, :]

    # Depthwise conv (reflect padding already baked into the halo columns).
    w_dw = w_dw_ref[...]
    y = w_dw[:, 0:1] * xw[:, 0:tile_t]
    for k in range(1, kernel_size):
        y = y + w_dw[:, k:k + 1] * xw[:, k:k + tile_t]
    y = y + b_dw_ref[...]                                              # (C, tile_t)

    # Adaptive channel norm: per-time-column stats over channels (unbiased std,
    # matching torch.std default ddof=1), eps added to sigma.
    mu = jnp.mean(y, axis=0, keepdims=True)                            # (1, tile_t)
    d = y - mu
    var = jnp.sum(d * d, axis=0, keepdims=True) * (1.0 / (C - 1))
    inv_sigma = pl.reciprocal(jnp.sqrt(var) + eps, approx=True)        # EUP vrcp
    n = d * inv_sigma * scale + shift                                  # (C, tile_t)

    # Pointwise convs on the MXU + tanh-GELU; gamma already folded into w2/b2.
    h = _gelu_tanh(jnp.dot(w1_ref[...], n,
                           preferred_element_type=jnp.float32) + b1_ref[...])
    y2 = jnp.dot(w2_ref[...], h, preferred_element_type=jnp.float32) + b2_ref[...]

    # Residual: re-read the lane-aligned x tile at the store (short live range).
    o_ref[...] = (y2 + x_ref[...].astype(jnp.float32)).astype(o_ref.dtype)


def _pick_tile_t(T, C, E, H, vmem_budget_bytes):
    """Largest lane-aligned divisor of T that fits a per-step VMEM budget."""
    # Rough f32 bytes per time column: double-buffered streams (x, p, out) plus
    # in-flight intermediates (xw, y/d/n, ss, h).
    per_col = 4 * (2 * (2 * C + E) + 6 * C + H)
    max_tile = max(128, vmem_budget_bytes // max(per_col, 1))
    best = None
    cand = 128
    while cand <= min(T, 4096):
        if T % cand == 0 and cand <= max_tile:
            best = cand
        cand += 128
    if best is not None:
        return best
    # TODO(synk): for T not a multiple of 128, pad T in the wrapper (and trim
    # outside) so output stores stay lane-dense instead of this fallback.
    return T


def adaptive_convnext1d(x, p, w_dw, b_dw, w_scale, b_scale, w_shift, b_shift,
                        w1, b1, w2, b2, gamma, *, eps=1e-4):
    """x: (B,C,T), p: (B,E,T); weights are squeezed torch Conv1d weights."""
    B, C, T = x.shape
    E = p.shape[1]
    H = w1.shape[0]
    K = w_dw.shape[1]
    pad = K // 2
    assert K % 2 == 1 and pad >= 1, "expects an odd depthwise kernel size >= 3"
    assert C >= 2, "unbiased channel std (ddof=1) needs at least 2 channels"
    assert T > pad, "reflect padding needs T > kernel_size // 2"

    # VMEM budget per generation (v7x: 64 MiB physical; v5e/v6e: 128 MiB).
    try:
        vmem_cap = pltpu.get_tpu_info().vmem_capacity_bytes
    except Exception:  # conservative fallback if the query is unavailable
        vmem_cap = 64 * 1024 * 1024
    vmem_limit = min(vmem_cap // 2, 64 * 1024 * 1024)

    tile_t = _pick_tile_t(T, C, E, H, vmem_limit // 2)
    n_t = T // tile_t

    # Precompute the tiny reflect halo tensor (B, n_t, C, 2*pad): for each tile
    # the pad columns to its left and right, with reflection at the sequence
    # ends (torch padding_mode='reflect').  No full x_pad copy is materialized.
    starts = np.arange(n_t) * tile_t
    left = starts[:, None] + np.arange(-pad, 0)[None, :]            # (n_t, pad)
    right = starts[:, None] + tile_t + np.arange(pad)[None, :]      # (n_t, pad)
    left = np.abs(left)                                             # reflect at 0
    right = np.where(right >= T, 2 * (T - 1) - right, right)        # reflect at T-1
    halo_idx = jnp.asarray(np.concatenate([left, right], axis=1).reshape(-1))
    halos = jnp.take(x, halo_idx, axis=2)                           # (B, C, n_t*2*pad)
    halos = halos.reshape(B, C, n_t, 2 * pad).transpose(0, 2, 1, 3)  # (B, n_t, C, 2*pad)

    # Fuse the two scale/shift 1x1 convs into a single (2C, E) matmul.
    w_ss = jnp.concatenate([w_scale, w_shift], axis=0)              # (2C, E)
    b_ss = jnp.concatenate([b_scale, b_shift], axis=0)[:, None]     # (2C, 1)

    # Fold the layer scale (gamma) into the second pointwise conv.
    gamma2 = gamma.reshape(C, 1)
    w2g = w2 * gamma2                                               # (C, H)
    b2g = b2[:, None] * gamma2                                      # (C, 1)

    kernel = functools.partial(_adaptive_convnext1d_kernel,
                               eps=eps, kernel_size=K, tile_t=tile_t)

    return pl.pallas_call(
        kernel,
        out_shape=jax.ShapeDtypeStruct((B, C, T), x.dtype),
        grid_spec=pltpu.PrefetchScalarGridSpec(
            num_scalar_prefetch=0,
            grid=(B, n_t),
            in_specs=[
                pl.BlockSpec((None, C, tile_t), lambda b, t: (b, 0, t)),           # x
                pl.BlockSpec((None, None, C, 2 * pad), lambda b, t: (b, t, 0, 0)),  # halo
                pl.BlockSpec((None, E, tile_t), lambda b, t: (b, 0, t)),           # p
                pl.BlockSpec((C, K), lambda b, t: (0, 0)),                         # dw weight
                pl.BlockSpec((C, 1), lambda b, t: (0, 0)),                         # dw bias
                pl.BlockSpec((2 * C, E), lambda b, t: (0, 0)),                     # fused ss weight
                pl.BlockSpec((2 * C, 1), lambda b, t: (0, 0)),                     # fused ss bias
                pl.BlockSpec((H, C), lambda b, t: (0, 0)),                         # pw1 weight
                pl.BlockSpec((H, 1), lambda b, t: (0, 0)),                         # pw1 bias
                pl.BlockSpec((C, H), lambda b, t: (0, 0)),                         # pw2 weight (gamma folded)
                pl.BlockSpec((C, 1), lambda b, t: (0, 0)),                         # pw2 bias (gamma folded)
            ],
            out_specs=pl.BlockSpec((None, C, tile_t), lambda b, t: (b, 0, t)),
        ),
        compiler_params=pltpu.CompilerParams(
            dimension_semantics=("parallel", "parallel"),
            vmem_limit_bytes=vmem_limit,
        ),
    )(x, halos, p, w_dw, b_dw[:, None], w_ss, b_ss,
      w1, b1[:, None], w2g, b2g)


def _reference(x, p, w_dw, b_dw, w_scale, b_scale, w_shift, b_shift,
               w1, b1, w2, b2, gamma, eps=1e-4):
    B, C, T = x.shape
    K = w_dw.shape[1]
    pad = K // 2
    xp = jnp.pad(x, ((0, 0), (0, 0), (pad, pad)), mode="reflect")
    y = b_dw[None, :, None] + sum(
        w_dw[None, :, k:k + 1] * xp[:, :, k:k + T] for k in range(K))
    mu = jnp.mean(y, axis=1, keepdims=True)
    sigma = jnp.std(y, axis=1, keepdims=True, ddof=1) + eps
    yn = (y - mu) / sigma
    scale = jnp.einsum("ce,bet->bct", w_scale, p) + b_scale[None, :, None]
    shift = jnp.einsum("ce,bet->bct", w_shift, p) + b_shift[None, :, None]
    z = yn * scale + shift
    h = _gelu_tanh(jnp.einsum("hc,bct->bht", w1, z) + b1[None, :, None])
    o = jnp.einsum("ch,bht->bct", w2, h) + b2[None, :, None]
    return o * gamma[None, :, :] + x


if __name__ == "__main__":
    B, C, E, H, T, K = 2, 16, 8, 32, 256, 7
    key = jax.random.PRNGKey(0)
    keys = jax.random.split(key, 12)

    x = jax.random.normal(keys[0], (B, C, T), dtype=jnp.float32)
    p = jax.random.normal(keys[1], (B, E, T), dtype=jnp.float32)
    # torch Conv1d weights with the trivial kernel dims squeezed out.
    w_dw = jax.random.normal(keys[2], (C, K), jnp.float32) * 0.1       # (C,1,K)->(C,K)
    b_dw = jax.random.normal(keys[3], (C,), jnp.float32) * 0.1
    w_scale = jax.random.normal(keys[4], (C, E), jnp.float32) * 0.1    # (C,E,1)->(C,E)
    b_scale = jax.random.normal(keys[5], (C,), jnp.float32) * 0.1 + 1.0
    w_shift = jax.random.normal(keys[6], (C, E), jnp.float32) * 0.1
    b_shift = jax.random.normal(keys[7], (C,), jnp.float32) * 0.1
    w1 = jax.random.normal(keys[8], (H, C), jnp.float32) * 0.1         # (H,C,1)->(H,C)
    b1 = jax.random.normal(keys[9], (H,), jnp.float32) * 0.1
    w2 = jax.random.normal(keys[10], (C, H), jnp.float32) * 0.1        # (C,H,1)->(C,H)
    b2 = jax.random.normal(keys[11], (C,), jnp.float32) * 0.1
    gamma = jnp.ones((C, 1), jnp.float32)  # module init: ones * scale (scale=1)

    out = adaptive_convnext1d(x, p, w_dw, b_dw, w_scale, b_scale, w_shift,
                              b_shift, w1, b1, w2, b2, gamma)
    out = jax.block_until_ready(out)

    ref = _reference(x, p, w_dw, b_dw, w_scale, b_scale, w_shift, b_shift,
                     w1, b1, w2, b2, gamma)
    assert out.shape == (B, C, T)
    # Tolerance covers f32 accumulation-order differences and the EUP approx
    # reciprocal used for 1/sigma.
    assert jnp.allclose(out, ref, atol=2e-3, rtol=2e-3), (
        float(jnp.max(jnp.abs(out - ref))))

    print("KERNEL_OK")
</pallas_src>

<mosaic_0001>
module attributes {stable_mosaic.version = 11 : i64} {
  func.func @_adaptive_convnext1d_kernel(%arg0: i32, %arg1: i32, %arg2: memref<1x16x256xf32, #tpu.memory_space<vmem>>, %arg3: memref<1x1x16x6xf32, #tpu.memory_space<vmem>>, %arg4: memref<1x8x256xf32, #tpu.memory_space<vmem>>, %arg5: memref<16x7xf32, #tpu.memory_space<vmem>>, %arg6: memref<16x1xf32, #tpu.memory_space<vmem>>, %arg7: memref<32x8xf32, #tpu.memory_space<vmem>>, %arg8: memref<32x1xf32, #tpu.memory_space<vmem>>, %arg9: memref<32x16xf32, #tpu.memory_space<vmem>>, %arg10: memref<32x1xf32, #tpu.memory_space<vmem>>, %arg11: memref<16x32xf32, #tpu.memory_space<vmem>>, %arg12: memref<16x1xf32, #tpu.memory_space<vmem>>, %arg13: memref<1x16x256xf32, #tpu.memory_space<vmem>>) attributes {dimension_semantics = [#tpu.dimension_semantics<parallel>, #tpu.dimension_semantics<parallel>], iteration_bounds = array<i64: 2, 1>, scalar_prefetch = 0 : i64, scratch_operands = 0 : i64, tpu.core_type = #tpu.core_type<tc>, window_params = [{transform_indices = @transform_0, window_bounds = array<i64: 1, 16, 256>}, {transform_indices = @transform_1, window_bounds = array<i64: 1, 1, 16, 6>}, {transform_indices = @transform_2, window_bounds = array<i64: 1, 8, 256>}, {pipeline_mode = #tpu.pipeline_mode<synchronous>, transform_indices = @transform_3, window_bounds = array<i64: 16, 7>}, {pipeline_mode = #tpu.pipeline_mode<synchronous>, transform_indices = @transform_4, window_bounds = array<i64: 16, 1>}, {pipeline_mode = #tpu.pipeline_mode<synchronous>, transform_indices = @transform_5, window_bounds = array<i64: 32, 8>}, {pipeline_mode = #tpu.pipeline_mode<synchronous>, transform_indices = @transform_6, window_bounds = array<i64: 32, 1>}, {pipeline_mode = #tpu.pipeline_mode<synchronous>, transform_indices = @transform_7, window_bounds = array<i64: 32, 16>}, {pipeline_mode = #tpu.pipeline_mode<synchronous>, transform_indices = @transform_8, window_bounds = array<i64: 32, 1>}, {pipeline_mode = #tpu.pipeline_mode<synchronous>, transform_indices = @transform_9, window_bounds = array<i64: 16, 32>}, {pipeline_mode = #tpu.pipeline_mode<synchronous>, transform_indices = @transform_10, window_bounds = array<i64: 16, 1>}, {transform_indices = @transform_11, window_bounds = array<i64: 1, 16, 256>}]} {
    %c0 = arith.constant 0 : index
    %c0_0 = arith.constant 0 : index
    %c0_1 = arith.constant 0 : index
    %0 = vector.load %arg2[%c0, %c0_0, %c0_1] : memref<1x16x256xf32, #tpu.memory_space<vmem>>, vector<1x16x256xf32>
    %1 = vector.shape_cast %0 : vector<1x16x256xf32> to vector<16x256xf32>
    %c0_2 = arith.constant 0 : index
    %c0_3 = arith.constant 0 : index
    %c0_4 = arith.constant 0 : index
    %c0_5 = arith.constant 0 : index
    %2 = vector.load %arg3[%c0_2, %c0_3, %c0_4, %c0_5] : memref<1x1x16x6xf32, #tpu.memory_space<vmem>>, vector<1x1x16x6xf32>
    %3 = vector.shape_cast %2 : vector<1x1x16x6xf32> to vector<16x6xf32>
    %4 = vector.extract_strided_slice %3 {offsets = [0, 0], sizes = [16, 3], strides = [1, 1]} : vector<16x6xf32> to vector<16x3xf32>
    %5 = vector.extract_strided_slice %3 {offsets = [0, 3], sizes = [16, 3], strides = [1, 1]} : vector<16x6xf32> to vector<16x3xf32>
    %6 = tpu.concatenate %4, %1, %5 in 1 : vector<16x3xf32>, vector<16x256xf32>, vector<16x3xf32> -> vector<16x262xf32>
    %c0_6 = arith.constant 0 : index
    %c0_7 = arith.constant 0 : index
    %7 = vector.load %arg7[%c0_6, %c0_7] : memref<32x8xf32, #tpu.memory_space<vmem>>, vector<32x8xf32>
    %c0_8 = arith.constant 0 : index
    %c0_9 = arith.constant 0 : index
    %c0_10 = arith.constant 0 : index
    %8 = vector.load %arg4[%c0_8, %c0_9, %c0_10] : memref<1x8x256xf32, #tpu.memory_space<vmem>>, vector<1x8x256xf32>
    %9 = vector.shape_cast %8 : vector<1x8x256xf32> to vector<8x256xf32>
    %cst = arith.constant dense<0.000000e+00> : vector<32x256xf32>
    %10 = tpu.matmul %7, %9, %cst {dimension_numbers = #tpu.dot_dimension_numbers<[1], [0], [0], [1], [0, 0, 1, 1], [], []>} : vector<32x8xf32>, vector<8x256xf32>, vector<32x256xf32> -> vector<32x256xf32>
    %c0_11 = arith.constant 0 : index
    %c0_12 = arith.constant 0 : index
    %11 = vector.load %arg8[%c0_11, %c0_12] : memref<32x1xf32, #tpu.memory_space<vmem>>, vector<32x1xf32>
    %12 = vector.broadcast %11 : vector<32x1xf32> to vector<32x256xf32>
    %13 = arith.addf %10, %12 : vector<32x256xf32>
    %14 = vector.extract_strided_slice %13 {offsets = [0, 0], sizes = [16, 256], strides = [1, 1]} : vector<32x256xf32> to vector<16x256xf32>
    %15 = vector.extract_strided_slice %13 {offsets = [16, 0], sizes = [16, 256], strides = [1, 1]} : vector<32x256xf32> to vector<16x256xf32>
    %c0_13 = arith.constant 0 : index
    %c0_14 = arith.constant 0 : index
    %16 = vector.load %arg5[%c0_13, %c0_14] : memref<16x7xf32, #tpu.memory_space<vmem>>, vector<16x7xf32>
    %17 = vector.extract_strided_slice %16 {offsets = [0, 0], sizes = [16, 1], strides = [1, 1]} : vector<16x7xf32> to vector<16x1xf32>
    %18 = vector.extract_strided_slice %6 {offsets = [0, 0], sizes = [16, 256], strides = [1, 1]} : vector<16x262xf32> to vector<16x256xf32>
    %19 = vector.broadcast %17 : vector<16x1xf32> to vector<16x256xf32>
    %20 = arith.mulf %19, %18 : vector<16x256xf32>
    %21 = vector.extract_strided_slice %16 {offsets = [0, 1], sizes = [16, 1], strides = [1, 1]} : vector<16x7xf32> to vector<16x1xf32>
    %22 = vector.extract_strided_slice %6 {offsets = [0, 1], sizes = [16, 256], strides = [1, 1]} : vector<16x262xf32> to vector<16x256xf32>
    %23 = vector.broadcast %21 : vector<16x1xf32> to vector<16x256xf32>
    %24 = arith.mulf %23, %22 : vector<16x256xf32>
    %25 = arith.addf %20, %24 : vector<16x256xf32>
    %26 = vector.extract_strided_slice %16 {offsets = [0, 2], sizes = [16, 1], strides = [1, 1]} : vector<16x7xf32> to vector<16x1xf32>
    %27 = vector.extract_strided_slice %6 {offsets = [0, 2], sizes = [16, 256], strides = [1, 1]} : vector<16x262xf32> to vector<16x256xf32>
    %28 = vector.broadcast %26 : vector<16x1xf32> to vector<16x256xf32>
    %29 = arith.mulf %28, %27 : vector<16x256xf32>
    %30 = arith.addf %25, %29 : vector<16x256xf32>
    %31 = vector.extract_strided_slice %16 {offsets = [0, 3], sizes = [16, 1], strides = [1, 1]} : vector<16x7xf32> to vector<16x1xf32>
    %32 = vector.extract_strided_slice %6 {offsets = [0, 3], sizes = [16, 256], strides = [1, 1]} : vector<16x262xf32> to vector<16x256xf32>
    %33 = vector.broadcast %31 : vector<16x1xf32> to vector<16x256xf32>
    %34 = arith.mulf %33, %32 : vector<16x256xf32>
    %35 = arith.addf %30, %34 : vector<16x256xf32>
    %36 = vector.extract_strided_slice %16 {offsets = [0, 4], sizes = [16, 1], strides = [1, 1]} : vector<16x7xf32> to vector<16x1xf32>
    %37 = vector.extract_strided_slice %6 {offsets = [0, 4], sizes = [16, 256], strides = [1, 1]} : vector<16x262xf32> to vector<16x256xf32>
    %38 = vector.broadcast %36 : vector<16x1xf32> to vector<16x256xf32>
    %39 = arith.mulf %38, %37 : vector<16x256xf32>
    %40 = arith.addf %35, %39 : vector<16x256xf32>
    %41 = vector.extract_strided_slice %16 {offsets = [0, 5], sizes = [16, 1], strides = [1, 1]} : vector<16x7xf32> to vector<16x1xf32>
    %42 = vector.extract_strided_slice %6 {offsets = [0, 5], sizes = [16, 256], strides = [1, 1]} : vector<16x262xf32> to vector<16x256xf32>
    %43 = vector.broadcast %41 : vector<16x1xf32> to vector<16x256xf32>
    %44 = arith.mulf %43, %42 : vector<16x256xf32>
    %45 = arith.addf %40, %44 : vector<16x256xf32>
    %46 = vector.extract_strided_slice %16 {offsets = [0, 6], sizes = [16, 1], strides = [1, 1]} : vector<16x7xf32> to vector<16x1xf32>
    %47 = vector.extract_strided_slice %6 {offsets = [0, 6], sizes = [16, 256], strides = [1, 1]} : vector<16x262xf32> to vector<16x256xf32>
    %48 = vector.broadcast %46 : vector<16x1xf32> to vector<16x256xf32>
    %49 = arith.mulf %48, %47 : vector<16x256xf32>
    %50 = arith.addf %45, %49 : vector<16x256xf32>
    %c0_15 = arith.constant 0 : index
    %c0_16 = arith.constant 0 : index
    %51 = vector.load %arg6[%c0_15, %c0_16] : memref<16x1xf32, #tpu.memory_space<vmem>>, vector<16x1xf32>
    %52 = vector.broadcast %51 : vector<16x1xf32> to vector<16x256xf32>
    %53 = arith.addf %50, %52 : vector<16x256xf32>
    %cst_17 = arith.constant dense<0.000000e+00> : vector<256xf32>
    %54 = vector.multi_reduction <add>, %53, %cst_17 [0] : vector<16x256xf32> to vector<256xf32>
    %55 = vector.shape_cast %54 : vector<256xf32> to vector<1x256xf32>
    %cst_18 = arith.constant 1.600000e+01 : f32
    %56 = vector.broadcast %cst_18 : f32 to vector<1x256xf32>
    %57 = arith.divf %55, %56 : vector<1x256xf32>
    %58 = vector.broadcast %57 : vector<1x256xf32> to vector<16x256xf32>
    %59 = arith.subf %53, %58 : vector<16x256xf32>
    %60 = arith.mulf %59, %59 : vector<16x256xf32>
    %cst_19 = arith.constant dense<0.000000e+00> : vector<256xf32>
    %61 = vector.multi_reduction <add>, %60, %cst_19 [0] : vector<16x256xf32> to vector<256xf32>
    %62 = vector.shape_cast %61 : vector<256xf32> to vector<1x256xf32>
    %cst_20 = arith.constant 0.0666666701 : f32
    %63 = vector.broadcast %cst_20 : f32 to vector<1x256xf32>
    %64 = arith.mulf %62, %63 : vector<1x256xf32>
    %65 = math.sqrt %64 : vector<1x256xf32>
    %cst_21 = arith.constant 9.99999974E-5 : f32
    %66 = vector.broadcast %cst_21 : f32 to vector<1x256xf32>
    %67 = arith.addf %65, %66 : vector<1x256xf32>
    %68 = tpu.reciprocal %67 {approx = true} : vector<1x256xf32> -> vector<1x256xf32>
    %69 = vector.broadcast %68 : vector<1x256xf32> to vector<16x256xf32>
    %70 = arith.mulf %59, %69 : vector<16x256xf32>
    %71 = arith.mulf %70, %14 : vector<16x256xf32>
    %72 = arith.addf %71, %15 : vector<16x256xf32>
    %c0_22 = arith.constant 0 : index
    %c0_23 = arith.constant 0 : index
    %73 = vector.load %arg9[%c0_22, %c0_23] : memref<32x16xf32, #tpu.memory_space<vmem>>, vector<32x16xf32>
    %cst_24 = arith.constant dense<0.000000e+00> : vector<32x256xf32>
    %74 = tpu.matmul %73, %72, %cst_24 {dimension_numbers = #tpu.dot_dimension_numbers<[1], [0], [0], [1], [0, 0, 1, 1], [], []>} : vector<32x16xf32>, vector<16x256xf32>, vector<32x256xf32> -> vector<32x256xf32>
    %c0_25 = arith.constant 0 : index
    %c0_26 = arith.constant 0 : index
    %75 = vector.load %arg10[%c0_25, %c0_26] : memref<32x1xf32, #tpu.memory_space<vmem>>, vector<32x1xf32>
    %76 = vector.broadcast %75 : vector<32x1xf32> to vector<32x256xf32>
    %77 = arith.addf %74, %76 : vector<32x256xf32>
    %cst_27 = arith.constant 5.000000e-01 : f32
    %78 = vector.broadcast %cst_27 : f32 to vector<32x256xf32>
    %79 = arith.mulf %78, %77 : vector<32x256xf32>
    %cst_28 = arith.constant 4.471500e-02 : f32
    %80 = vector.broadcast %cst_28 : f32 to vector<32x256xf32>
    %81 = arith.mulf %80, %77 : vector<32x256xf32>
    %82 = arith.mulf %81, %77 : vector<32x256xf32>
    %83 = arith.mulf %82, %77 : vector<32x256xf32>
    %84 = arith.addf %77, %83 : vector<32x256xf32>
    %cst_29 = arith.constant 0.797884583 : f32
    %85 = vector.broadcast %cst_29 : f32 to vector<32x256xf32>
    %86 = arith.mulf %85, %84 : vector<32x256xf32>
    %87 = math.tanh %86 : vector<32x256xf32>
    %cst_30 = arith.constant 1.000000e+00 : f32
    %88 = vector.broadcast %cst_30 : f32 to vector<32x256xf32>
    %89 = arith.addf %88, %87 : vector<32x256xf32>
    %90 = arith.mulf %79, %89 : vector<32x256xf32>
    %c0_31 = arith.constant 0 : index
    %c0_32 = arith.constant 0 : index
    %91 = vector.load %arg11[%c0_31, %c0_32] : memref<16x32xf32, #tpu.memory_space<vmem>>, vector<16x32xf32>
    %cst_33 = arith.constant dense<0.000000e+00> : vector<16x256xf32>
    %92 = tpu.matmul %91, %90, %cst_33 {dimension_numbers = #tpu.dot_dimension_numbers<[1], [0], [0], [1], [0, 0, 1, 1], [], []>} : vector<16x32xf32>, vector<32x256xf32>, vector<16x256xf32> -> vector<16x256xf32>
    %c0_34 = arith.constant 0 : index
    %c0_35 = arith.constant 0 : index
    %93 = vector.load %arg12[%c0_34, %c0_35] : memref<16x1xf32, #tpu.memory_space<vmem>>, vector<16x1xf32>
    %94 = vector.broadcast %93 : vector<16x1xf32> to vector<16x256xf32>
    %95 = arith.addf %92, %94 : vector<16x256xf32>
    %c0_36 = arith.constant 0 : index
    %c0_37 = arith.constant 0 : index
    %c0_38 = arith.constant 0 : index
    %96 = vector.load %arg2[%c0_36, %c0_37, %c0_38] : memref<1x16x256xf32, #tpu.memory_space<vmem>>, vector<1x16x256xf32>
    %97 = vector.shape_cast %96 : vector<1x16x256xf32> to vector<16x256xf32>
    %98 = arith.addf %95, %97 : vector<16x256xf32>
    %c0_39 = arith.constant 0 : index
    %c0_40 = arith.constant 0 : index
    %c0_41 = arith.constant 0 : index
    %99 = vector.load %arg13[%c0_39, %c0_40, %c0_41] : memref<1x16x256xf32, #tpu.memory_space<vmem>>, vector<1x16x256xf32>
    %100 = vector.shape_cast %99 : vector<1x16x256xf32> to vector<16x256xf32>
    %101 = vector.shape_cast %98 : vector<16x256xf32> to vector<1x16x256xf32>
    tpu.vector_store %arg13[%c0_39, %c0_40, %c0_41], %101 {strides = array<i32>} : memref<1x16x256xf32, #tpu.memory_space<vmem>>, vector<1x16x256xf32>,
    return
  }
  func.func @transform_0(%arg0: i32, %arg1: i32) -> (i32, i32, i32) {
    %c0_i32 = arith.constant 0 : i32
    %c0_i32_0 = arith.constant 0 : i32
    return %arg0, %c0_i32, %arg1 : i32, i32, i32
  }
  func.func @transform_1(%arg0: i32, %arg1: i32) -> (i32, i32, i32, i32) {
    %c0_i32 = arith.constant 0 : i32
    %c0_i32_0 = arith.constant 0 : i32
    %c0_i32_1 = arith.constant 0 : i32
    return %arg0, %arg1, %c0_i32, %c0_i32_0 : i32, i32, i32, i32
  }
  func.func @transform_2(%arg0: i32, %arg1: i32) -> (i32, i32, i32) {
    %c0_i32 = arith.constant 0 : i32
    %c0_i32_0 = arith.constant 0 : i32
    return %arg0, %c0_i32, %arg1 : i32, i32, i32
  }
  func.func @transform_3(%arg0: i32, %arg1: i32) -> (i32, i32) {
    %c0_i32 = arith.constant 0 : i32
    %c0_i32_0 = arith.constant 0 : i32
    %c0_i32_1 = arith.constant 0 : i32
    return %c0_i32, %c0_i32_0 : i32, i32
  }
  func.func @transform_4(%arg0: i32, %arg1: i32) -> (i32, i32) {
    %c0_i32 = arith.constant 0 : i32
    %c0_i32_0 = arith.constant 0 : i32
    %c0_i32_1 = arith.constant 0 : i32
    return %c0_i32, %c0_i32_0 : i32, i32
  }
  func.func @transform_5(%arg0: i32, %arg1: i32) -> (i32, i32) {
    %c0_i32 = arith.constant 0 : i32
    %c0_i32_0 = arith.constant 0 : i32
    %c0_i32_1 = arith.constant 0 : i32
    return %c0_i32, %c0_i32_0 : i32, i32
  }
  func.func @transform_6(%arg0: i32, %arg1: i32) -> (i32, i32) {
    %c0_i32 = arith.constant 0 : i32
    %c0_i32_0 = arith.constant 0 : i32
    %c0_i32_1 = arith.constant 0 : i32
    return %c0_i32, %c0_i32_0 : i32, i32
  }
  func.func @transform_7(%arg0: i32, %arg1: i32) -> (i32, i32) {
    %c0_i32 = arith.constant 0 : i32
    %c0_i32_0 = arith.constant 0 : i32
    %c0_i32_1 = arith.constant 0 : i32
    return %c0_i32, %c0_i32_0 : i32, i32
  }
  func.func @transform_8(%arg0: i32, %arg1: i32) -> (i32, i32) {
    %c0_i32 = arith.constant 0 : i32
    %c0_i32_0 = arith.constant 0 : i32
    %c0_i32_1 = arith.constant 0 : i32
    return %c0_i32, %c0_i32_0 : i32, i32
  }
  func.func @transform_9(%arg0: i32, %arg1: i32) -> (i32, i32) {
    %c0_i32 = arith.constant 0 : i32
    %c0_i32_0 = arith.constant 0 : i32
    %c0_i32_1 = arith.constant 0 : i32
    return %c0_i32, %c0_i32_0 : i32, i32
  }
  func.func @transform_10(%arg0: i32, %arg1: i32) -> (i32, i32) {
    %c0_i32 = arith.constant 0 : i32
    %c0_i32_0 = arith.constant 0 : i32
    %c0_i32_1 = arith.constant 0 : i32
    return %c0_i32, %c0_i32_0 : i32, i32
  }
  func.func @transform_11(%arg0: i32, %arg1: i32) -> (i32, i32, i32) {
    %c0_i32 = arith.constant 0 : i32
    %c0_i32_0 = arith.constant 0 : i32
    return %arg0, %c0_i32, %arg1 : i32, i32, i32
  }
}

</mosaic_0001>

<llo_original>
// kernel: tpu_custom_call.1
$region0: #{tpu_custom_call.1}
  #allocation0 [shape = 'u32[]', space=smem, size = 0x4, offset = 0x4, fixed_abs, tag = 'smem constant byte address 0x4 - core index']
  #allocation1 [shape = 'u32[144,128]{1,0:T(1,128)}', space=vmem, size = 0x12000, scoped, tag = 'internal scratch']
  %s0 = inlined_call_operand.vmem [shape: f32[2,16,256], index: 0, kind: input, shape index: {}]
  %s1 = inlined_call_operand.vmem [shape: f32[2,1,16,6], index: 1, kind: input, shape index: {}]
  %s2 = inlined_call_operand.vmem [shape: f32[2,8,256], index: 2, kind: input, shape index: {}]
  %s3 = inlined_call_operand.vmem [shape: f32[16,7], index: 3, kind: input, shape index: {}]
  %s4 = inlined_call_operand.vmem [shape: f32[16,1], index: 4, kind: input, shape index: {}]
  %s5 = inlined_call_operand.vmem [shape: f32[32,8], index: 5, kind: input, shape index: {}]
  %s6 = inlined_call_operand.vmem [shape: f32[32,1], index: 6, kind: input, shape index: {}]
  %s7 = inlined_call_operand.vmem [shape: f32[32,16], index: 7, kind: input, shape index: {}]
  %s8 = inlined_call_operand.vmem [shape: f32[32,1], index: 8, kind: input, shape index: {}]
  %s9 = inlined_call_operand.vmem [shape: f32[16,32], index: 9, kind: input, shape index: {}]
  %s10 = inlined_call_operand.vmem [shape: f32[16,1], index: 10, kind: input, shape index: {}]
  %s11 = inlined_call_operand.hbm [shape: f32[2,16,256], index: 11, kind: output, shape index: {}]
  %s12 = sld [smem:[#allocation0]]
  $region77: #{tpu_custom_call.1} parent=0
    _
  %s14 = ssub.s32 1, %s12
  %s15 = scalar_select 0, %s14, %s12
  $region1: #{tpu_custom_call.1} parent=0
    #allocation2 [shape = 'u8[32768]{0}', space=vmem, size = 0x8000, scoped, tag = 'output window, operand 0']
    #allocation3 [shape = 's32[2]{0}', space=sflag, size = 0x8, scoped, tag = 'scoped memory for tpu_custom_call.1']
    %16 = vsyncpa [#allocation3], 0
    %s17 = scalar_lea.sflag [#allocation3], 1
    %18 = vsyncpa %s17, 0
    loop: start=0, step=1, limit=4
    $region2: #{tpu_custom_call.1} parent=1 // loop_pre_header
      _
    $region3: #{tpu_custom_call.1} parent=1 // loop_header
      %s20 = sphi 0, %s24
      %p21 = scmp.ge.s32.totalorder %s20, 4
      %s27 = sphi 0, %s39
      %s28 = sphi 0, %s35
      %s29 = sphi 0, %s27
      %s30 = sphi 0, %s28
      %s31 = sphi 0, %s29
      %s32 = sphi 0, %s30
      %s44 = sphi 0, %s46
      %s47 = sphi 0, %s44
      %s48 = sphi 0, %s47
      %s64 = sphi 0, %s48
      %s72 = sphi 0, %s74
      %s75 = sphi 0, %s72
      %s76 = sphi 0, %s75
      %s92 = sphi 0, %s76
      %s100 = sphi 0, %s102
      %s103 = sphi 0, %s100
      %s104 = sphi 0, %s103
      %s120 = sphi 0, %s104
      %s124 = sphi 0, %s124
      %s126 = sphi 0, %s124
      %s127 = sphi 0, %s126
      %s141 = sphi 0, %s127
      %s145 = sphi 0, %s145
      %s147 = sphi 0, %s145
      %s148 = sphi 0, %s147
      %s162 = sphi 0, %s148
      %s166 = sphi 0, %s166
      %s168 = sphi 0, %s166
      %s169 = sphi 0, %s168
      %s183 = sphi 0, %s169
      %s187 = sphi 0, %s187
      %s189 = sphi 0, %s187
      %s190 = sphi 0, %s189
      %s204 = sphi 0, %s190
      %s208 = sphi 0, %s208
      %s210 = sphi 0, %s208
      %s211 = sphi 0, %s210
      %s225 = sphi 0, %s211
      %s229 = sphi 0, %s229
      %s231 = sphi 0, %s229
      %s232 = sphi 0, %s231
      %s246 = sphi 0, %s232
      %s250 = sphi 0, %s250
      %s252 = sphi 0, %s250
      %s253 = sphi 0, %s252
      %s267 = sphi 0, %s253
      %s271 = sphi 0, %s271
      %s273 = sphi 0, %s271
      %s274 = sphi 0, %s273
      %s288 = sphi 0, %s274
      %s296 = sphi 0, %s298
      %s299 = sphi 0, %s296
      %s300 = sphi 0, %s299
      %s316 = sphi 0, %s300
    $region4: #{tpu_custom_call.1} parent=1 // loop_header_branch
      %23 = sbr.rel (%p21) target = $region8
    $region5: #{tpu_custom_call.1} parent=1 // loop_body
      %s25 = ssub.s32 %s20, 1
      %s26 = ssub.s32 %s20, 2
      %s33 = sadd.s32 1, %s28
      %p34 = scmp.ge.s32.totalorder %s33, 1
      %s35 = scalar_select %p34, 0, %s33
      %s36 = sadd.s32 1, %s27
      %s37 = scalar_select %p34, %s36, %s27
      %p38 = scmp.ge.s32.totalorder %s37, 2
      %s39 = scalar_select %p38, 0, %s37
      %s40 = ssub.s32 %s27, %s39
      %s41 = ssub.s32 %s28, %s35
      %s42 = sor.u32 %s40, %s41
      %p43 = scmp.eq.s32.totalorder %s42, 0
      %s45 = sadd.s32 %s44, 1
      %s46 = scalar_select %p43, %s44, %s45
      %p49 = pneg %p43
      %p50 = scmp.eq.s32.totalorder %s20, 1
      %p51 = por %p49, %p50
      %p52 = scmp.ne.s32.totalorder %s44, %s47
      %p53 = scmp.eq.s32.totalorder %s20, 0
      %p54 = por %p52, %p53
      %p55 = scmp.ne.s32.totalorder %s44, %s47
      %p56 = scmp.eq.s32.totalorder %s25, 1
      %p57 = por %p55, %p56
      %p58 = scmp.ne.s32.totalorder %s47, %s48
      %p59 = scmp.eq.s32.totalorder %s25, 0
      %p60 = por %p58, %p59
      %p61 = scmp.ne.s32.totalorder %s47, %s48
      %p62 = scmp.eq.s32.totalorder %s26, 1
      %p63 = por %p61, %p62
      %p65 = scmp.ne.s32.totalorder %s48, %s64
      %p66 = scmp.eq.s32.totalorder %s26, 0
      %p67 = por %p65, %p66
      %s68 = ssub.s32 %s27, %s39
      %s69 = ssub.s32 %s28, %s35
      %s70 = sor.u32 %s68, %s69
      %p71 = scmp.eq.s32.totalorder %s70, 0
      %s73 = sadd.s32 %s72, 1
      %s74 = scalar_select %p71, %s72, %s73
      %p77 = pneg %p71
      %p78 = scmp.eq.s32.totalorder %s20, 1
      %p79 = por %p77, %p78
      %p80 = scmp.ne.s32.totalorder %s72, %s75
      %p81 = scmp.eq.s32.totalorder %s20, 0
      %p82 = por %p80, %p81
      %p83 = scmp.ne.s32.totalorder %s72, %s75
      %p84 = scmp.eq.s32.totalorder %s25, 1
      %p85 = por %p83, %p84
      %p86 = scmp.ne.s32.totalorder %s75, %s76
      %p87 = scmp.eq.s32.totalorder %s25, 0
      %p88 = por %p86, %p87
      %p89 = scmp.ne.s32.totalorder %s75, %s76
      %p90 = scmp.eq.s32.totalorder %s26, 1
      %p91 = por %p89, %p90
      %p93 = scmp.ne.s32.totalorder %s76, %s92
      %p94 = scmp.eq.s32.totalorder %s26, 0
      %p95 = por %p93, %p94
      %s96 = ssub.s32 %s27, %s39
      %s97 = ssub.s32 %s28, %s35
      %s98 = sor.u32 %s96, %s97
      %p99 = scmp.eq.s32.totalorder %s98, 0
      %s101 = sadd.s32 %s100, 1
      %s102 = scalar_select %p99, %s100, %s101
      %p105 = pneg %p99
      %p106 = scmp.eq.s32.totalorder %s20, 1
      %p107 = por %p105, %p106
      %p108 = scmp.ne.s32.totalorder %s100, %s103
      %p109 = scmp.eq.s32.totalorder %s20, 0
      %p110 = por %p108, %p109
      %p111 = scmp.ne.s32.totalorder %s100, %s103
      %p112 = scmp.eq.s32.totalorder %s25, 1
      %p113 = por %p111, %p112
      %p114 = scmp.ne.s32.totalorder %s103, %s104
      %p115 = scmp.eq.s32.totalorder %s25, 0
      %p116 = por %p114, %p115
      %p117 = scmp.ne.s32.totalorder %s103, %s104
      %p118 = scmp.eq.s32.totalorder %s26, 1
      %p119 = por %p117, %p118
      %p121 = scmp.ne.s32.totalorder %s104, %s120
      %p122 = scmp.eq.s32.totalorder %s26, 0
      %p123 = por %p121, %p122
      %s125 = sadd.s32 %s124, 1
      %p128 = scmp.eq.s32.totalorder %s20, 1
      %p129 = scmp.ne.s32.totalorder %s124, %s126
      %p130 = scmp.eq.s32.totalorder %s20, 0
      %p131 = por %p129, %p130
      %p132 = scmp.ne.s32.totalorder %s124, %s126
      %p133 = scmp.eq.s32.totalorder %s25, 1
      %p134 = por %p132, %p133
      %p135 = scmp.ne.s32.totalorder %s126, %s127
      %p136 = scmp.eq.s32.totalorder %s25, 0
      %p137 = por %p135, %p136
      %p138 = scmp.ne.s32.totalorder %s126, %s127
      %p139 = scmp.eq.s32.totalorder %s26, 1
      %p140 = por %p138, %p139
      %p142 = scmp.ne.s32.totalorder %s127, %s141
      %p143 = scmp.eq.s32.totalorder %s26, 0
      %p144 = por %p142, %p143
      %s146 = sadd.s32 %s145, 1
      %p149 = scmp.eq.s32.totalorder %s20, 1
      %p150 = scmp.ne.s32.totalorder %s145, %s147
      %p151 = scmp.eq.s32.totalorder %s20, 0
      %p152 = por %p150, %p151
      %p153 = scmp.ne.s32.totalorder %s145, %s147
      %p154 = scmp.eq.s32.totalorder %s25, 1
      %p155 = por %p153, %p154
      %p156 = scmp.ne.s32.totalorder %s147, %s148
      %p157 = scmp.eq.s32.totalorder %s25, 0
      %p158 = por %p156, %p157
      %p159 = scmp.ne.s32.totalorder %s147, %s148
      %p160 = scmp.eq.s32.totalorder %s26, 1
      %p161 = por %p159, %p160
      %p163 = scmp.ne.s32.totalorder %s148, %s162
      %p164 = scmp.eq.s32.totalorder %s26, 0
      %p165 = por %p163, %p164
      %s167 = sadd.s32 %s166, 1
      %p170 = scmp.eq.s32.totalorder %s20, 1
      %p171 = scmp.ne.s32.totalorder %s166, %s168
      %p172 = scmp.eq.s32.totalorder %s20, 0
      %p173 = por %p171, %p172
      %p174 = scmp.ne.s32.totalorder %s166, %s168
      %p175 = scmp.eq.s32.totalorder %s25, 1
      %p176 = por %p174, %p175
      %p177 = scmp.ne.s32.totalorder %s168, %s169
      %p178 = scmp.eq.s32.totalorder %s25, 0
      %p179 = por %p177, %p178
      %p180 = scmp.ne.s32.totalorder %s168, %s169
      %p181 = scmp.eq.s32.totalorder %s26, 1
      %p182 = por %p180, %p181
      %p184 = scmp.ne.s32.totalorder %s169, %s183
      %p185 = scmp.eq.s32.totalorder %s26, 0
      %p186 = por %p184, %p185
      %s188 = sadd.s32 %s187, 1
      %p191 = scmp.eq.s32.totalorder %s20, 1
      %p192 = scmp.ne.s32.totalorder %s187, %s189
      %p193 = scmp.eq.s32.totalorder %s20, 0
      %p194 = por %p192, %p193
      %p195 = scmp.ne.s32.totalorder %s187, %s189
      %p196 = scmp.eq.s32.totalorder %s25, 1
      %p197 = por %p195, %p196
      %p198 = scmp.ne.s32.totalorder %s189, %s190
      %p199 = scmp.eq.s32.totalorder %s25, 0
      %p200 = por %p198, %p199
      %p201 = scmp.ne.s32.totalorder %s189, %s190
      %p202 = scmp.eq.s32.totalorder %s26, 1
      %p203 = por %p201, %p202
      %p205 = scmp.ne.s32.totalorder %s190, %s204
      %p206 = scmp.eq.s32.totalorder %s26, 0
      %p207 = por %p205, %p206
      %s209 = sadd.s32 %s208, 1
      %p212 = scmp.eq.s32.totalorder %s20, 1
      %p213 = scmp.ne.s32.totalorder %s208, %s210
      %p214 = scmp.eq.s32.totalorder %s20, 0
      %p215 = por %p213, %p214
      %p216 = scmp.ne.s32.totalorder %s208, %s210
      %p217 = scmp.eq.s32.totalorder %s25, 1
      %p218 = por %p216, %p217
      %p219 = scmp.ne.s32.totalorder %s210, %s211
      %p220 = scmp.eq.s32.totalorder %s25, 0
      %p221 = por %p219, %p220
      %p222 = scmp.ne.s32.totalorder %s210, %s211
      %p223 = scmp.eq.s32.totalorder %s26, 1
      %p224 = por %p222, %p223
      %p226 = scmp.ne.s32.totalorder %s211, %s225
      %p227 = scmp.eq.s32.totalorder %s26, 0
      %p228 = por %p226, %p227
      %s230 = sadd.s32 %s229, 1
      %p233 = scmp.eq.s32.totalorder %s20, 1
      %p234 = scmp.ne.s32.totalorder %s229, %s231
      %p235 = scmp.eq.s32.totalorder %s20, 0
      %p236 = por %p234, %p235
      %p237 = scmp.ne.s32.totalorder %s229, %s231
      %p238 = scmp.eq.s32.totalorder %s25, 1
      %p239 = por %p237, %p238
      %p240 = scmp.ne.s32.totalorder %s231, %s232
      %p241 = scmp.eq.s32.totalorder %s25, 0
      %p242 = por %p240, %p241
      %p243 = scmp.ne.s32.totalorder %s231, %s232
      %p244 = scmp.eq.s32.totalorder %s26, 1
      %p245 = por %p243, %p244
      %p247 = scmp.ne.s32.totalorder %s232, %s246
      %p248 = scmp.eq.s32.totalorder %s26, 0
      %p249 = por %p247, %p248
      %s251 = sadd.s32 %s250, 1
      %p254 = scmp.eq.s32.totalorder %s20, 1
      %p255 = scmp.ne.s32.totalorder %s250, %s252
      %p256 = scmp.eq.s32.totalorder %s20, 0
      %p257 = por %p255, %p256
      %p258 = scmp.ne.s32.totalorder %s250, %s252
      %p259 = scmp.eq.s32.totalorder %s25, 1
      %p260 = por %p258, %p259
      %p261 = scmp.ne.s32.totalorder %s252, %s253
      %p262 = scmp.eq.s32.totalorder %s25, 0
      %p263 = por %p261, %p262
      %p264 = scmp.ne.s32.totalorder %s252, %s253
      %p265 = scmp.eq.s32.totalorder %s26, 1
      %p266 = por %p264, %p265
      %p268 = scmp.ne.s32.totalorder %s253, %s267
      %p269 = scmp.eq.s32.totalorder %s26, 0
      %p270 = por %p268, %p269
      %s272 = sadd.s32 %s271, 1
      %p275 = scmp.eq.s32.totalorder %s20, 1
      %p276 = scmp.ne.s32.totalorder %s271, %s273
      %p277 = scmp.eq.s32.totalorder %s20, 0
      %p278 = por %p276, %p277
      %p279 = scmp.ne.s32.totalorder %s271, %s273
      %p280 = scmp.eq.s32.totalorder %s25, 1
      %p281 = por %p279, %p280
      %p282 = scmp.ne.s32.totalorder %s273, %s274
      %p283 = scmp.eq.s32.totalorder %s25, 0
      %p284 = por %p282, %p283
      %p285 = scmp.ne.s32.totalorder %s273, %s274
      %p286 = scmp.eq.s32.totalorder %s26, 1
      %p287 = por %p285, %p286
      %p289 = scmp.ne.s32.totalorder %s274, %s288
      %p290 = scmp.eq.s32.totalorder %s26, 0
      %p291 = por %p289, %p290
      %s292 = ssub.s32 %s27, %s39
      %s293 = ssub.s32 %s28, %s35
      %s294 = sor.u32 %s292, %s293
      %p295 = scmp.eq.s32.totalorder %s294, 0
      %s297 = sadd.s32 %s296, 1
      %s298 = scalar_select %p295, %s296, %s297
      %p301 = pneg %p295
      %p302 = scmp.eq.s32.totalorder %s20, 1
      %p303 = por %p301, %p302
      %p304 = scmp.ne.s32.totalorder %s296, %s299
      %p305 = scmp.eq.s32.totalorder %s20, 0
      %p306 = por %p304, %p305
      %p307 = scmp.ne.s32.totalorder %s296, %s299
      %p308 = scmp.eq.s32.totalorder %s25, 1
      %p309 = por %p307, %p308
      %p310 = scmp.ne.s32.totalorder %s299, %s300
      %p311 = scmp.eq.s32.totalorder %s25, 0
      %p312 = por %p310, %p311
      %p313 = scmp.ne.s32.totalorder %s299, %s300
      %p314 = scmp.eq.s32.totalorder %s26, 1
      %p315 = por %p313, %p314
      %p317 = scmp.ne.s32.totalorder %s300, %s316
      %p318 = scmp.eq.s32.totalorder %s26, 0
      %p319 = por %p317, %p318
      %p320 = scmp.le.s32.totalorder 1, %s20
      %p321 = scmp.lt.s32.totalorder %s20, 3
      %p322 = pnand %p320, %p321
      %p323 = pneg %p322
      // Predicated region
      $region9: #{tpu_custom_call.1} parent=5 // pred_check
        _
      $region10: #{tpu_custom_call.1} parent=5 // pred_check_branch
        %325 = sbr.rel (%p322) target = $region12
      $region11: #{tpu_custom_call.1} parent=5 // pred_region
        %s326 = ssub.s32 %s20, 1
        // Predicated region
        $region13: #{tpu_custom_call.1} parent=11 // pred_check
          %p327 = pneg %p137
        $region14: #{tpu_custom_call.1} parent=11 // pred_check_branch
          %329 = sbr.rel (%p327) target = $region16
        $region15: #{tpu_custom_call.1} parent=11 // pred_region
          _
        $region16: #{tpu_custom_call.1} parent=11 // pred_fallthru
          _
        // Predicated region
        $region17: #{tpu_custom_call.1} parent=11 // pred_check
          %p330 = pneg %p158
        $region18: #{tpu_custom_call.1} parent=11 // pred_check_branch
          %332 = sbr.rel (%p330) target = $region20
        $region19: #{tpu_custom_call.1} parent=11 // pred_region
          _
        $region20: #{tpu_custom_call.1} parent=11 // pred_fallthru
          _
        // Predicated region
        $region21: #{tpu_custom_call.1} parent=11 // pred_check
          %p333 = pneg %p179
        $region22: #{tpu_custom_call.1} parent=11 // pred_check_branch
          %335 = sbr.rel (%p333) target = $region24
        $region23: #{tpu_custom_call.1} parent=11 // pred_region
          _
        $region24: #{tpu_custom_call.1} parent=11 // pred_fallthru
          _
        // Predicated region
        $region25: #{tpu_custom_call.1} parent=11 // pred_check
          %p336 = pneg %p200
        $region26: #{tpu_custom_call.1} parent=11 // pred_check_branch
          %338 = sbr.rel (%p336) target = $region28
        $region27: #{tpu_custom_call.1} parent=11 // pred_region
          _
        $region28: #{tpu_custom_call.1} parent=11 // pred_fallthru
          _
        // Predicated region
        $region29: #{tpu_custom_call.1} parent=11 // pred_check
          %p339 = pneg %p221
        $region30: #{tpu_custom_call.1} parent=11 // pred_check_branch
          %341 = sbr.rel (%p339) target = $region32
        $region31: #{tpu_custom_call.1} parent=11 // pred_region
          _
        $region32: #{tpu_custom_call.1} parent=11 // pred_fallthru
          _
        // Predicated region
        $region33: #{tpu_custom_call.1} parent=11 // pred_check
          %p342 = pneg %p242
        $region34: #{tpu_custom_call.1} parent=11 // pred_check_branch
          %344 = sbr.rel (%p342) target = $region36
        $region35: #{tpu_custom_call.1} parent=11 // pred_region
          _
        $region36: #{tpu_custom_call.1} parent=11 // pred_fallthru
          _
        // Predicated region
        $region37: #{tpu_custom_call.1} parent=11 // pred_check
          %p345 = pneg %p263
        $region38: #{tpu_custom_call.1} parent=11 // pred_check_branch
          %347 = sbr.rel (%p345) target = $region40
        $region39: #{tpu_custom_call.1} parent=11 // pred_region
          _
        $region40: #{tpu_custom_call.1} parent=11 // pred_fallthru
          _
        // Predicated region
        $region41: #{tpu_custom_call.1} parent=11 // pred_check
          %p348 = pneg %p284
        $region42: #{tpu_custom_call.1} parent=11 // pred_check_branch
          %350 = sbr.rel (%p348) target = $region44
        $region43: #{tpu_custom_call.1} parent=11 // pred_region
          _
        $region44: #{tpu_custom_call.1} parent=11 // pred_fallthru
          _
      $region12: #{tpu_custom_call.1} parent=5 // pred_fallthru
        _
      %p351 = scmp.lt.s32.totalorder %s20, 2
      // Predicated region
      $region45: #{tpu_custom_call.1} parent=5 // pred_check
        %p352 = pneg %p351
      $region46: #{tpu_custom_call.1} parent=5 // pred_check_branch
        %354 = sbr.rel (%p352) target = $region48
      $region47: #{tpu_custom_call.1} parent=5 // pred_region
        // Predicated region
        $region49: #{tpu_custom_call.1} parent=47 // pred_check
          %p355 = pneg %p54
        $region50: #{tpu_custom_call.1} parent=47 // pred_check_branch
          %357 = sbr.rel (%p355) target = $region52
        $region51: #{tpu_custom_call.1} parent=47 // pred_region
          %s358 = smul.u32 2, %s28
          %p359 = scmp.lt.s32.totalorder %s27, 1
          %s360 = scalar_select %p359, %s27, 1
          %p361 = scmp.lt.s32.totalorder %s358, 1
          %s362 = scalar_select %p361, %s358, 1
          %s363 = smul.addr %s360, 4
          %s364 = sadd.s32 %s362, %s363
          %s365 = smul.addr %s364, 8
          %s366 = scalar_lea.vmem %s0, %s365
          %s367 = smul.u32 2, %s28
        $region52: #{tpu_custom_call.1} parent=47 // pred_fallthru
          _
        // Predicated region
        $region53: #{tpu_custom_call.1} parent=47 // pred_check
          %p368 = pneg %p82
        $region54: #{tpu_custom_call.1} parent=47 // pred_check_branch
          %370 = sbr.rel (%p368) target = $region56
        $region55: #{tpu_custom_call.1} parent=47 // pred_region
          %p371 = scmp.lt.s32.totalorder %s27, 1
          %s372 = scalar_select %p371, %s27, 1
          %p373 = scmp.lt.s32.totalorder %s28, 0
          %s374 = scalar_select %p373, %s28, 0
          %s375 = smul.addr %s374, 2
          %s376 = smul.addr %s372, 2
          %s377 = sadd.s32 %s375, %s376
          %s378 = smul.addr %s377, 8
          %s379 = scalar_lea.vmem %s1, %s378
        $region56: #{tpu_custom_call.1} parent=47 // pred_fallthru
          _
        // Predicated region
        $region57: #{tpu_custom_call.1} parent=47 // pred_check
          %p380 = pneg %p110
        $region58: #{tpu_custom_call.1} parent=47 // pred_check_branch
          %382 = sbr.rel (%p380) target = $region60
        $region59: #{tpu_custom_call.1} parent=47 // pred_region
          %s383 = smul.u32 2, %s28
          %p384 = scmp.lt.s32.totalorder %s27, 1
          %s385 = scalar_select %p384, %s27, 1
          %p386 = scmp.lt.s32.totalorder %s383, 1
          %s387 = scalar_select %p386, %s383, 1
          %s388 = smul.addr %s385, 2
          %s389 = sadd.s32 %s387, %s388
          %s390 = smul.addr %s389, 8
          %s391 = scalar_lea.vmem %s2, %s390
          %s392 = smul.u32 2, %s28
        $region60: #{tpu_custom_call.1} parent=47 // pred_fallthru
          _
      $region48: #{tpu_custom_call.1} parent=5 // pred_fallthru
        _
      %p393 = scmp.le.s32.totalorder 1, %s20
      %p394 = scmp.lt.s32.totalorder %s20, 3
      %p395 = pnand %p393, %p394
      %p396 = pneg %p395
      // Predicated region
      $region61: #{tpu_custom_call.1} parent=5 // pred_check
        _
      $region62: #{tpu_custom_call.1} parent=5 // pred_check_branch
        %398 = sbr.rel (%p395) target = $region64
      $region63: #{tpu_custom_call.1} parent=5 // pred_region
        %s399 = ssub.s32 %s20, 1
        %s400 = smul.u32 2, %s30
        %p401 = scmp.lt.s32.totalorder %s29, 1
        %s402 = scalar_select %p401, %s29, 1
        %p403 = scmp.lt.s32.totalorder %s400, 1
        %s404 = scalar_select %p403, %s400, 1
        %s405 = smul.addr %s402, 4
        %s406 = sadd.s32 %s404, %s405
        %s407 = smul.addr %s406, 8
        %s408 = scalar_lea.vmem %s0, %s407
        %p409 = pneg %p60
        %p410 = pneg %p57
        %p411 = scmp.lt.s32.totalorder %s29, 1
        %s412 = scalar_select %p411, %s29, 1
        %p413 = scmp.lt.s32.totalorder %s30, 0
        %s414 = scalar_select %p413, %s30, 0
        %s415 = smul.addr %s414, 2
        %s416 = smul.addr %s412, 2
        %s417 = sadd.s32 %s415, %s416
        %s418 = smul.addr %s417, 8
        %s419 = scalar_lea.vmem %s1, %s418
        %p420 = pneg %p88
        %p421 = pneg %p85
        %s422 = smul.u32 2, %s30
        %p423 = scmp.lt.s32.totalorder %s29, 1
        %s424 = scalar_select %p423, %s29, 1
        %p425 = scmp.lt.s32.totalorder %s422, 1
        %s426 = scalar_select %p425, %s422, 1
        %s427 = smul.addr %s424, 2
        %s428 = sadd.s32 %s426, %s427
        %s429 = smul.addr %s428, 8
        %s430 = scalar_lea.vmem %s2, %s429
        %p431 = pneg %p116
        %p432 = pneg %p113
        %p433 = pneg %p137
        %p434 = pneg %p134
        %p435 = pneg %p158
        %p436 = pneg %p155
        %p437 = pneg %p179
        %p438 = pneg %p176
        %p439 = pneg %p200
        %p440 = pneg %p197
        %p441 = pneg %p221
        %p442 = pneg %p218
        %p443 = pneg %p242
        %p444 = pneg %p239
        %p445 = pneg %p263
        %p446 = pneg %p260
        %p447 = pneg %p284
        %p448 = pneg %p281
        %p449 = pneg %p312
        %p450 = pneg %p309
        %s451 = sand.u32 %s299, 1
        %s452 = scalar_lea.sflag [#allocation3], %s451
        %s453 = sand.u32 %s299, 1
        %s454 = smul.addr %s453, 32
        %s455 = scalar_lea.vmem [#allocation2], %s454
        %s456 = smul.u32 2, %s30
        %p457 = scmp.lt.s32.totalorder %s29, 1
        %s458 = scalar_select %p457, %s29, 1
        %p459 = scmp.lt.s32.totalorder %s456, 1
        %s460 = scalar_select %p459, %s456, 1
        %s461 = smul.addr %s458, 4
        %s462 = sadd.s32 %s460, %s461
        %s463 = smul.addr %s462, 8
        %s464 = scalar_lea.vmem %s0, %s463
        %s465 = smul.u32 2, %s30
        %p466 = scmp.lt.s32.totalorder %s29, 1
        %s467 = scalar_select %p466, %s29, 1
        %p468 = scmp.lt.s32.totalorder %s30, 0
        %s469 = scalar_select %p468, %s30, 0
        %s470 = smul.addr %s469, 2
        %s471 = smul.addr %s467, 2
        %s472 = sadd.s32 %s470, %s471
        %s473 = smul.addr %s472, 8
        %s474 = scalar_lea.vmem %s1, %s473
        %s475 = smul.u32 2, %s30
        %p476 = scmp.lt.s32.totalorder %s29, 1
        %s477 = scalar_select %p476, %s29, 1
        %p478 = scmp.lt.s32.totalorder %s475, 1
        %s479 = scalar_select %p478, %s475, 1
        %s480 = smul.addr %s477, 2
        %s481 = sadd.s32 %s479, %s480
        %s482 = smul.addr %s481, 8
        %s483 = scalar_lea.vmem %s2, %s482
        %s484 = smul.u32 2, %s30
        %s485 = smul.u32 2, %s30
        %v486 = vld [vmem:[%s464] sm:$0xff]
        %v487 = vld [vmem:[%s464 + $0x8] sm:$0xff]
        %v488 = vld [vmem:[%s464 + $0x10] sm:$0xff]
        %v489 = vld [vmem:[%s464 + $0x18] sm:$0xff]
        %v490 = vld [vmem:[%s474] sm:$0xff]
        %v491 = vld [vmem:[%s474 + $0x8] sm:$0xff]
        %496 = vrot.lane.b32.xlu0 %v486, 3
        %v497 = vpop.permute.xlu0 %496
        %498 = vrot.lane.b32.xlu0 %v487, 3
        %v499 = vpop.permute.xlu0 %498
        %500 = vrot.lane.b32.xlu0 %v488, 3
        %v501 = vpop.permute.xlu0 %500
        %502 = vrot.lane.b32.xlu0 %v489, 3
        %v503 = vpop.permute.xlu0 %502
        %vm504 = vcmask 23552
        %v505 = vsel %vm504, %v497, %v499
        %v506 = vsel %vm504, %v501, %v503
        %v513 = vsel %vm504, %v490, %v497
        %v514 = vsel %vm504, %v491, %v501
        %v515 = vsel %vm504, %v499, %v490
        %v516 = vsel %vm504, %v503, %v491
        %v517 = vld [vmem:[%s5] sm:$0xff]
        %v518 = vld [vmem:[%s5 + $0x8] sm:$0xff]
        %v519 = vld [vmem:[%s5 + $0x10] sm:$0xff]
        %v520 = vld [vmem:[%s5 + $0x18] sm:$0xff]
        %v521 = vld [vmem:[%s483] sm:$0xff]
        %v522 = vld [vmem:[%s483 + $0x8] sm:$0xff]
        %v523 = vld [vmem:[%s6] sm:$0xff]
        %v524 = vld [vmem:[%s6 + $0x8] sm:$0xff]
        %v525 = vld [vmem:[%s6 + $0x10] sm:$0xff]
        %v526 = vld [vmem:[%s6 + $0x18] sm:$0xff]
        %528 = vset.pattern.permute.xlu0 0
        %529 = vperm.xlu0 %528, %v523
        %v530 = vpop.permute.xlu0 %529
        %533 = vset.pattern.permute.xlu0 0
        %534 = vperm.xlu0 %533, %v524
        %v535 = vpop.permute.xlu0 %534
        %538 = vset.pattern.permute.xlu0 0
        %539 = vperm.xlu0 %538, %v525
        %v540 = vpop.permute.xlu0 %539
        %543 = vset.pattern.permute.xlu0 0
        %544 = vperm.xlu0 %543, %v526
        %v545 = vpop.permute.xlu0 %544
        %vm547 = vcmask 64512
        %v549 = vsel %vm547, %v517, 0
        %v552 = vsel %vm547, %v518, 0
        %v555 = vsel %vm547, %v519, 0
        %v558 = vsel %vm547, %v520, 0
        %560 = vmatprep.subr.mxu0 0.0
        %561 = vmatpush1.msra.mxu0 0.0
        %562 = vmatprep.subr.mxu0 0.0
        %563 = vmatpush1.msra.mxu0 0.0
        %564 = vmatprep.subr.mxu0 0.0
        %565 = vmatpush1.msra.mxu0 0.0
        %566 = vmatprep.subr.mxu0 0.0
        %567 = vmatpush1.msra.mxu0 0.0
        %568 = vmatprep.subr.mxu0 0.0
        %569 = vmatpush1.msra.mxu0 0.0
        %570 = vmatprep.subr.mxu0 0.0
        %571 = vmatpush1.msra.mxu0 0.0
        %572 = vmatprep.subr.mxu0 0.0
        %573 = vmatpush1.msra.mxu0 0.0
        %574 = vmatprep.subr.mxu0 0.0
        %575 = vmatpush1.msra.mxu0 0.0
        %576 = vmatprep.subr.mxu0 0.0
        %577 = vmatpush1.msra.mxu0 0.0
        %578 = vmatprep.subr.mxu0 0.0
        %579 = vmatpush1.msra.mxu0 0.0
        %580 = vmatprep.subr.mxu0 0.0
        %581 = vmatpush1.msra.mxu0 0.0
        %582 = vmatprep.subr.mxu0 0.0
        %583 = vmatpush1.msra.mxu0 0.0
        %584 = vmatprep.subr.mxu0 0.0
        %585 = vmatpush1.msra.mxu0 0.0
        %586 = vmatprep.subr.mxu0 0.0
        %587 = vmatpush1.msra.mxu0 0.0
        %588 = vmatprep.subr.mxu0 0.0
        %589 = vmatpush1.msra.mxu0 0.0
        %590 = vmatprep.subr.mxu0 %v522
        %591 = vmatpush1.msra.mxu0 %v521
        %592 = vmatprep.subr.mxu0 0.0
        %593 = vmatpush2.msra.mxu0 0.0
        %594 = vmatprep.subr.mxu0 0.0
        %595 = vmatpush2.msra.mxu0 0.0
        %596 = vmatprep.subr.mxu0 0.0
        %597 = vmatpush2.msra.mxu0 0.0
        %598 = vmatprep.subr.mxu0 0.0
        %599 = vmatpush2.msra.mxu0 0.0
        %600 = vmatprep.subr.mxu0 0.0
        %601 = vmatpush2.msra.mxu0 0.0
        %602 = vmatprep.subr.mxu0 0.0
        %603 = vmatpush2.msra.mxu0 0.0
        %604 = vmatprep.subr.mxu0 0.0
        %605 = vmatpush2.msra.mxu0 0.0
        %606 = vmatprep.subr.mxu0 0.0
        %607 = vmatpush2.msra.mxu0 0.0
        %608 = vmatprep.subr.mxu0 0.0
        %609 = vmatpush2.msra.mxu0 0.0
        %610 = vmatprep.subr.mxu0 0.0
        %611 = vmatpush2.msra.mxu0 0.0
        %612 = vmatprep.subr.mxu0 0.0
        %613 = vmatpush2.msra.mxu0 0.0
        %614 = vmatprep.subr.mxu0 0.0
        %615 = vmatpush2.msra.mxu0 0.0
        %616 = vmatprep.subr.mxu0 0.0
        %617 = vmatpush2.msra.mxu0 0.0
        %618 = vmatprep.subr.mxu0 0.0
        %619 = vmatpush2.msra.mxu0 0.0
        %620 = vmatprep.subr.mxu0 0.0
        %621 = vmatpush2.msra.mxu0 0.0
        %622 = vmatprep.subr.mxu0 0.0
        %623 = vmatpush2.msra.mxu0 0.0
        %624 = vmatprep.mubr.f32.mxu0 0.0
        %625 = vmatmul.mubr.f32.gmra.mxu0 %v549
        %v626 = vpop.f32.mrf.mxu0
        %v627 = vadd.f32 %v530, %v626
        %v628 = vpop.f32.mrf.mxu0
        %v629 = vadd.f32 %v530, %v628
        %630 = vmatprep.mubr.f32.mxu0 0.0
        %631 = vmatmul.mubr.f32.gmra.mxu0 %v552
        %v632 = vpop.f32.mrf.mxu0
        %v633 = vadd.f32 %v535, %v632
        %v634 = vpop.f32.mrf.mxu0
        %v635 = vadd.f32 %v535, %v634
        %636 = vmatprep.mubr.f32.mxu0 0.0
        %637 = vmatmul.mubr.f32.gmra.mxu0 %v555
        %v638 = vpop.f32.mrf.mxu0
        %v639 = vadd.f32 %v540, %v638
        %v640 = vpop.f32.mrf.mxu0
        %v641 = vadd.f32 %v540, %v640
        %642 = vmatprep.mubr.f32.mxu0 0.0
        %643 = vmatmul.mubr.f32.gmra.mxu0 %v558
        %v644 = vpop.f32.mrf.mxu0
        %v645 = vadd.f32 %v545, %v644
        %v646 = vpop.f32.mrf.mxu0
        %v647 = vadd.f32 %v545, %v646
        %648 = vdwg.mxu0
        %v649 = vld [vmem:[%s3] sm:$0xff]
        %v650 = vld [vmem:[%s3 + $0x8] sm:$0xff]
        %652 = vset.pattern.permute.xlu0 0
        %653 = vperm.xlu0 %652, %v649
        %v654 = vpop.permute.xlu0 %653
        %657 = vset.pattern.permute.xlu0 0
        %658 = vperm.xlu0 %657, %v650
        %v659 = vpop.permute.xlu0 %658
        %v661 = vmul.f32 %v654, %v513
        %v662 = vmul.f32 %v654, %v505
        %v663 = vmul.f32 %v659, %v514
        %v664 = vmul.f32 %v659, %v506
        %665 = vset.pattern.permute.xlu0 1
        %666 = vperm.xlu0 %665, %v649
        %v667 = vpop.permute.xlu0 %666
        %669 = vset.pattern.permute.xlu0 1
        %670 = vperm.xlu0 %669, %v650
        %v671 = vpop.permute.xlu0 %670
        %v673 = vmul.f32 %v667, %v513
        %v674 = vmul.f32 %v667, %v505
        %v675 = vmul.f32 %v667, %v515
        %v676 = vmul.f32 %v671, %v514
        %v677 = vmul.f32 %v671, %v506
        %v678 = vmul.f32 %v671, %v516
        %685 = vrot.lane.b32.xlu0 %v673, 127
        %v686 = vpop.permute.xlu0 %685
        %687 = vrot.lane.b32.xlu0 %v674, 127
        %v688 = vpop.permute.xlu0 %687
        %689 = vrot.lane.b32.xlu0 %v675, 127
        %v690 = vpop.permute.xlu0 %689
        %691 = vrot.lane.b32.xlu0 %v676, 127
        %v692 = vpop.permute.xlu0 %691
        %693 = vrot.lane.b32.xlu0 %v677, 127
        %v694 = vpop.permute.xlu0 %693
        %695 = vrot.lane.b32.xlu0 %v678, 127
        %v696 = vpop.permute.xlu0 %695
        %vm697 = vcmask 1039360
        %v698 = vsel %vm697, %v686, %v688
        %v699 = vsel %vm697, %v688, %v690
        %v700 = vsel %vm697, %v692, %v694
        %v701 = vsel %vm697, %v694, %v696
        %v706 = vadd.f32 %v661, %v698
        %v707 = vadd.f32 %v662, %v699
        %v708 = vadd.f32 %v663, %v700
        %v709 = vadd.f32 %v664, %v701
        %710 = vset.pattern.permute.xlu0 2
        %711 = vperm.xlu0 %710, %v649
        %v712 = vpop.permute.xlu0 %711
        %714 = vset.pattern.permute.xlu0 2
        %715 = vperm.xlu0 %714, %v650
        %v716 = vpop.permute.xlu0 %715
        %v718 = vmul.f32 %v712, %v513
        %v719 = vmul.f32 %v712, %v505
        %v720 = vmul.f32 %v712, %v515
        %v721 = vmul.f32 %v716, %v514
        %v722 = vmul.f32 %v716, %v506
        %v723 = vmul.f32 %v716, %v516
        %730 = vrot.lane.b32.xlu0 %v718, 126
        %v731 = vpop.permute.xlu0 %730
        %732 = vrot.lane.b32.xlu0 %v719, 126
        %v733 = vpop.permute.xlu0 %732
        %734 = vrot.lane.b32.xlu0 %v720, 126
        %v735 = vpop.permute.xlu0 %734
        %736 = vrot.lane.b32.xlu0 %v721, 126
        %v737 = vpop.permute.xlu0 %736
        %738 = vrot.lane.b32.xlu0 %v722, 126
        %v739 = vpop.permute.xlu0 %738
        %740 = vrot.lane.b32.xlu0 %v723, 126
        %v741 = vpop.permute.xlu0 %740
        %vm742 = vcmask 1031168
        %v743 = vsel %vm742, %v731, %v733
        %v744 = vsel %vm742, %v733, %v735
        %v745 = vsel %vm742, %v737, %v739
        %v746 = vsel %vm742, %v739, %v741
        %v751 = vadd.f32 %v706, %v743
        %v752 = vadd.f32 %v707, %v744
        %v753 = vadd.f32 %v708, %v745
        %v754 = vadd.f32 %v709, %v746
        %755 = vset.pattern.permute.xlu0 3
        %756 = vperm.xlu0 %755, %v649
        %v757 = vpop.permute.xlu0 %756
        %759 = vset.pattern.permute.xlu0 3
        %760 = vperm.xlu0 %759, %v650
        %v761 = vpop.permute.xlu0 %760
        %v763 = vmul.f32 %v757, %v513
        %v764 = vmul.f32 %v757, %v505
        %v765 = vmul.f32 %v757, %v515
        %v766 = vmul.f32 %v761, %v514
        %v767 = vmul.f32 %v761, %v506
        %v768 = vmul.f32 %v761, %v516
        %775 = vrot.lane.b32.xlu0 %v763, 125
        %v776 = vpop.permute.xlu0 %775
        %777 = vrot.lane.b32.xlu0 %v764, 125
        %v778 = vpop.permute.xlu0 %777
        %779 = vrot.lane.b32.xlu0 %v765, 125
        %v780 = vpop.permute.xlu0 %779
        %781 = vrot.lane.b32.xlu0 %v766, 125
        %v782 = vpop.permute.xlu0 %781
        %783 = vrot.lane.b32.xlu0 %v767, 125
        %v784 = vpop.permute.xlu0 %783
        %785 = vrot.lane.b32.xlu0 %v768, 125
        %v786 = vpop.permute.xlu0 %785
        %vm787 = vcmask 1022976
        %v788 = vsel %vm787, %v776, %v778
        %v789 = vsel %vm787, %v778, %v780
        %v790 = vsel %vm787, %v782, %v784
        %v791 = vsel %vm787, %v784, %v786
        %v796 = vadd.f32 %v751, %v788
        %v797 = vadd.f32 %v752, %v789
        %v798 = vadd.f32 %v753, %v790
        %v799 = vadd.f32 %v754, %v791
        %800 = vset.pattern.permute.xlu0 4
        %801 = vperm.xlu0 %800, %v649
        %v802 = vpop.permute.xlu0 %801
        %804 = vset.pattern.permute.xlu0 4
        %805 = vperm.xlu0 %804, %v650
        %v806 = vpop.permute.xlu0 %805
        %v808 = vmul.f32 %v802, %v513
        %v809 = vmul.f32 %v802, %v505
        %v810 = vmul.f32 %v802, %v515
        %v811 = vmul.f32 %v806, %v514
        %v812 = vmul.f32 %v806, %v506
        %v813 = vmul.f32 %v806, %v516
        %820 = vrot.lane.b32.xlu0 %v808, 124
        %v821 = vpop.permute.xlu0 %820
        %822 = vrot.lane.b32.xlu0 %v809, 124
        %v823 = vpop.permute.xlu0 %822
        %824 = vrot.lane.b32.xlu0 %v810, 124
        %v825 = vpop.permute.xlu0 %824
        %826 = vrot.lane.b32.xlu0 %v811, 124
        %v827 = vpop.permute.xlu0 %826
        %828 = vrot.lane.b32.xlu0 %v812, 124
        %v829 = vpop.permute.xlu0 %828
        %830 = vrot.lane.b32.xlu0 %v813, 124
        %v831 = vpop.permute.xlu0 %830
        %vm832 = vcmask 1014784
        %v833 = vsel %vm832, %v821, %v823
        %v834 = vsel %vm832, %v823, %v825
        %v835 = vsel %vm832, %v827, %v829
        %v836 = vsel %vm832, %v829, %v831
        %v841 = vadd.f32 %v796, %v833
        %v842 = vadd.f32 %v797, %v834
        %v843 = vadd.f32 %v798, %v835
        %v844 = vadd.f32 %v799, %v836
        %845 = vset.pattern.permute.xlu0 5
        %846 = vperm.xlu0 %845, %v649
        %v847 = vpop.permute.xlu0 %846
        %849 = vset.pattern.permute.xlu0 5
        %850 = vperm.xlu0 %849, %v650
        %v851 = vpop.permute.xlu0 %850
        %v853 = vmul.f32 %v847, %v513
        %v854 = vmul.f32 %v847, %v505
        %v855 = vmul.f32 %v847, %v515
        %v856 = vmul.f32 %v851, %v514
        %v857 = vmul.f32 %v851, %v506
        %v858 = vmul.f32 %v851, %v516
        %865 = vrot.lane.b32.xlu0 %v853, 123
        %v866 = vpop.permute.xlu0 %865
        %867 = vrot.lane.b32.xlu0 %v854, 123
        %v868 = vpop.permute.xlu0 %867
        %869 = vrot.lane.b32.xlu0 %v855, 123
        %v870 = vpop.permute.xlu0 %869
        %871 = vrot.lane.b32.xlu0 %v856, 123
        %v872 = vpop.permute.xlu0 %871
        %873 = vrot.lane.b32.xlu0 %v857, 123
        %v874 = vpop.permute.xlu0 %873
        %875 = vrot.lane.b32.xlu0 %v858, 123
        %v876 = vpop.permute.xlu0 %875
        %vm877 = vcmask 1006592
        %v878 = vsel %vm877, %v866, %v868
        %v879 = vsel %vm877, %v868, %v870
        %v880 = vsel %vm877, %v872, %v874
        %v881 = vsel %vm877, %v874, %v876
        %v886 = vadd.f32 %v841, %v878
        %v887 = vadd.f32 %v842, %v879
        %v888 = vadd.f32 %v843, %v880
        %v889 = vadd.f32 %v844, %v881
        %890 = vset.pattern.permute.xlu0 6
        %891 = vperm.xlu0 %890, %v649
        %v892 = vpop.permute.xlu0 %891
        %894 = vset.pattern.permute.xlu0 6
        %895 = vperm.xlu0 %894, %v650
        %v896 = vpop.permute.xlu0 %895
        %v898 = vmul.f32 %v892, %v513
        %v899 = vmul.f32 %v892, %v505
        %v900 = vmul.f32 %v892, %v515
        %v901 = vmul.f32 %v896, %v514
        %v902 = vmul.f32 %v896, %v506
        %v903 = vmul.f32 %v896, %v516
        %910 = vrot.lane.b32.xlu0 %v898, 122
        %v911 = vpop.permute.xlu0 %910
        %912 = vrot.lane.b32.xlu0 %v899, 122
        %v913 = vpop.permute.xlu0 %912
        %914 = vrot.lane.b32.xlu0 %v900, 122
        %v915 = vpop.permute.xlu0 %914
        %916 = vrot.lane.b32.xlu0 %v901, 122
        %v917 = vpop.permute.xlu0 %916
        %918 = vrot.lane.b32.xlu0 %v902, 122
        %v919 = vpop.permute.xlu0 %918
        %920 = vrot.lane.b32.xlu0 %v903, 122
        %v921 = vpop.permute.xlu0 %920
        %vm922 = vcmask 998400
        %v923 = vsel %vm922, %v911, %v913
        %v924 = vsel %vm922, %v913, %v915
        %v925 = vsel %vm922, %v917, %v919
        %v926 = vsel %vm922, %v919, %v921
        %v931 = vadd.f32 %v886, %v923
        %v932 = vadd.f32 %v887, %v924
        %v933 = vadd.f32 %v888, %v925
        %v934 = vadd.f32 %v889, %v926
        %v935 = vld [vmem:[%s4] sm:$0xff]
        %v936 = vld [vmem:[%s4 + $0x8] sm:$0xff]
        %938 = vset.pattern.permute.xlu0 0
        %939 = vperm.xlu0 %938, %v935
        %v940 = vpop.permute.xlu0 %939
        %943 = vset.pattern.permute.xlu0 0
        %944 = vperm.xlu0 %943, %v936
        %v945 = vpop.permute.xlu0 %944
        %v947 = vadd.f32 %v931, %v940
        %v948 = vadd.f32 %v932, %v940
        %v949 = vadd.f32 %v933, %v945
        %v950 = vadd.f32 %v934, %v945
        %v951 = vadd.f32 %v947, %v949
        %v952 = vrot.slane %v951, 4
        %v953 = vadd.f32 %v951, %v952
        %v954 = vrot.slane %v953, 2
        %v955 = vadd.f32 %v953, %v954
        %v956 = vrot.slane %v955, 1
        %v957 = vadd.f32 %v955, %v956
        %v958 = vadd.f32 %v948, %v950
        %v959 = vrot.slane %v958, 4
        %v960 = vadd.f32 %v958, %v959
        %v961 = vrot.slane %v960, 2
        %v962 = vadd.f32 %v960, %v961
        %v963 = vrot.slane %v962, 1
        %v964 = vadd.f32 %v962, %v963
        %v965 = vrcp.pop 16.0
        %v966 = vmul.f32 %v957, %v965
        %v967 = vmul.f32 %v964, %v965
        %v968 = vsub.f32 %v947, %v966
        %v969 = vsub.f32 %v948, %v967
        %v970 = vsub.f32 %v949, %v966
        %v971 = vsub.f32 %v950, %v967
        %v972 = vmul.f32 %v968, %v968
        %v973 = vmul.f32 %v969, %v969
        %v974 = vmul.f32 %v970, %v970
        %v975 = vmul.f32 %v971, %v971
        %v976 = vadd.f32 %v972, %v974
        %v977 = vrot.slane %v976, 4
        %v978 = vadd.f32 %v976, %v977
        %v979 = vrot.slane %v978, 2
        %v980 = vadd.f32 %v978, %v979
        %v981 = vrot.slane %v980, 1
        %v982 = vadd.f32 %v980, %v981
        %v983 = vadd.f32 %v973, %v975
        %v984 = vrot.slane %v983, 4
        %v985 = vadd.f32 %v983, %v984
        %v986 = vrot.slane %v985, 2
        %v987 = vadd.f32 %v985, %v986
        %v988 = vrot.slane %v987, 1
        %v989 = vadd.f32 %v987, %v988
        %v990 = vmul.f32 %v982, 0.06666667
        %v991 = vmul.f32 %v989, 0.06666667
        %v992 = vrsqrt.pop %v990
        %v993 = vmul.f32 %v990, %v992
        %vm994 = vcmp.eq.f32.partialorder %v990, inf
        %v995 = vsel %vm994, %v990, %v993
        %vm996 = vcmp.eq.f32.partialorder %v990, 0.0
        %v997 = vand.u32 %v990, 2147483648
        %v998 = vsel %vm996, %v997, %v995
        %v999 = vrsqrt.pop %v991
        %v1000 = vmul.f32 %v991, %v999
        %vm1001 = vcmp.eq.f32.partialorder %v991, inf
        %v1002 = vsel %vm1001, %v991, %v1000
        %vm1003 = vcmp.eq.f32.partialorder %v991, 0.0
        %v1004 = vand.u32 %v991, 2147483648
        %v1005 = vsel %vm1003, %v1004, %v1002
        %v1006 = vadd.f32 %v998, 0.0001
        %v1007 = vadd.f32 %v1005, 0.0001
        %v1008 = vrcp.pop %v1006
        %v1009 = vrcp.pop %v1007
        %v1010 = vmul.f32 %v968, %v1008
        %v1011 = vmul.f32 %v969, %v1009
        %v1012 = vmul.f32 %v970, %v1008
        %v1013 = vmul.f32 %v971, %v1009
        %v1014 = vmul.f32 %v1010, %v627
        %v1015 = vmul.f32 %v1011, %v629
        %v1016 = vmul.f32 %v1012, %v633
        %v1017 = vmul.f32 %v1013, %v635
        %v1018 = vadd.f32 %v1014, %v639
        %v1019 = vadd.f32 %v1015, %v641
        %v1020 = vadd.f32 %v1016, %v645
        %v1021 = vadd.f32 %v1017, %v647
        %v1022 = vld [vmem:[%s7] sm:$0xff]
        %v1023 = vld [vmem:[%s7 + $0x8] sm:$0xff]
        %v1024 = vld [vmem:[%s7 + $0x10] sm:$0xff]
        %v1025 = vld [vmem:[%s7 + $0x18] sm:$0xff]
        %v1026 = vld [vmem:[%s8] sm:$0xff]
        %v1027 = vld [vmem:[%s8 + $0x8] sm:$0xff]
        %v1028 = vld [vmem:[%s8 + $0x10] sm:$0xff]
        %v1029 = vld [vmem:[%s8 + $0x18] sm:$0xff]
        %1031 = vset.pattern.permute.xlu0 0
        %1032 = vperm.xlu0 %1031, %v1026
        %v1033 = vpop.permute.xlu0 %1032
        %1036 = vset.pattern.permute.xlu0 0
        %1037 = vperm.xlu0 %1036, %v1027
        %v1038 = vpop.permute.xlu0 %1037
        %1041 = vset.pattern.permute.xlu0 0
        %1042 = vperm.xlu0 %1041, %v1028
        %v1043 = vpop.permute.xlu0 %1042
        %1046 = vset.pattern.permute.xlu0 0
        %1047 = vperm.xlu0 %1046, %v1029
        %v1048 = vpop.permute.xlu0 %1047
        %vm1050 = vcmask 130048
        %v1052 = vsel %vm1050, %v1022, 0
        %v1055 = vsel %vm1050, %v1023, 0
        %v1058 = vsel %vm1050, %v1024, 0
        %v1061 = vsel %vm1050, %v1025, 0
        %1063 = vmatprep.subr.mxu0 0.0
        %1064 = vmatpush1.msra.mxu0 0.0
        %1065 = vmatprep.subr.mxu0 0.0
        %1066 = vmatpush1.msra.mxu0 0.0
        %1067 = vmatprep.subr.mxu0 0.0
        %1068 = vmatpush1.msra.mxu0 0.0
        %1069 = vmatprep.subr.mxu0 0.0
        %1070 = vmatpush1.msra.mxu0 0.0
        %1071 = vmatprep.subr.mxu0 0.0
        %1072 = vmatpush1.msra.mxu0 0.0
        %1073 = vmatprep.subr.mxu0 0.0
        %1074 = vmatpush1.msra.mxu0 0.0
        %1075 = vmatprep.subr.mxu0 0.0
        %1076 = vmatpush1.msra.mxu0 0.0
        %1077 = vmatprep.subr.mxu0 0.0
        %1078 = vmatpush1.msra.mxu0 0.0
        %1079 = vmatprep.subr.mxu0 0.0
        %1080 = vmatpush1.msra.mxu0 0.0
        %1081 = vmatprep.subr.mxu0 0.0
        %1082 = vmatpush1.msra.mxu0 0.0
        %1083 = vmatprep.subr.mxu0 0.0
        %1084 = vmatpush1.msra.mxu0 0.0
        %1085 = vmatprep.subr.mxu0 0.0
        %1086 = vmatpush1.msra.mxu0 0.0
        %1087 = vmatprep.subr.mxu0 0.0
        %1088 = vmatpush1.msra.mxu0 0.0
        %1089 = vmatprep.subr.mxu0 0.0
        %1090 = vmatpush1.msra.mxu0 0.0
        %1091 = vmatprep.subr.mxu0 %v1021
        %1092 = vmatpush1.msra.mxu0 %v1020
        %1093 = vmatprep.subr.mxu0 %v1019
        %1094 = vmatpush1.msra.mxu0 %v1018
        %1095 = vmatprep.subr.mxu0 0.0
        %1096 = vmatpush2.msra.mxu0 0.0
        %1097 = vmatprep.subr.mxu0 0.0
        %1098 = vmatpush2.msra.mxu0 0.0
        %1099 = vmatprep.subr.mxu0 0.0
        %1100 = vmatpush2.msra.mxu0 0.0
        %1101 = vmatprep.subr.mxu0 0.0
        %1102 = vmatpush2.msra.mxu0 0.0
        %1103 = vmatprep.subr.mxu0 0.0
        %1104 = vmatpush2.msra.mxu0 0.0
        %1105 = vmatprep.subr.mxu0 0.0
        %1106 = vmatpush2.msra.mxu0 0.0
        %1107 = vmatprep.subr.mxu0 0.0
        %1108 = vmatpush2.msra.mxu0 0.0
        %1109 = vmatprep.subr.mxu0 0.0
        %1110 = vmatpush2.msra.mxu0 0.0
        %1111 = vmatprep.subr.mxu0 0.0
        %1112 = vmatpush2.msra.mxu0 0.0
        %1113 = vmatprep.subr.mxu0 0.0
        %1114 = vmatpush2.msra.mxu0 0.0
        %1115 = vmatprep.subr.mxu0 0.0
        %1116 = vmatpush2.msra.mxu0 0.0
        %1117 = vmatprep.subr.mxu0 0.0
        %1118 = vmatpush2.msra.mxu0 0.0
        %1119 = vmatprep.subr.mxu0 0.0
        %1120 = vmatpush2.msra.mxu0 0.0
        %1121 = vmatprep.subr.mxu0 0.0
        %1122 = vmatpush2.msra.mxu0 0.0
        %1123 = vmatprep.subr.mxu0 0.0
        %1124 = vmatpush2.msra.mxu0 0.0
        %1125 = vmatprep.subr.mxu0 0.0
        %1126 = vmatpush2.msra.mxu0 0.0
        %1127 = vmatprep.mubr.f32.mxu0 0.0
        %1128 = vmatmul.mubr.f32.gmra.mxu0 %v1052
        %v1129 = vpop.f32.mrf.mxu0
        %v1130 = vadd.f32 %v1033, %v1129
        %v1131 = vpop.f32.mrf.mxu0
        %v1132 = vadd.f32 %v1033, %v1131
        %1133 = vmatprep.mubr.f32.mxu0 0.0
        %1134 = vmatmul.mubr.f32.gmra.mxu0 %v1055
        %v1135 = vpop.f32.mrf.mxu0
        %v1136 = vadd.f32 %v1038, %v1135
        %v1137 = vpop.f32.mrf.mxu0
        %v1138 = vadd.f32 %v1038, %v1137
        %1139 = vmatprep.mubr.f32.mxu0 0.0
        %1140 = vmatmul.mubr.f32.gmra.mxu0 %v1058
        %v1141 = vpop.f32.mrf.mxu0
        %v1142 = vadd.f32 %v1043, %v1141
        %v1143 = vpop.f32.mrf.mxu0
        %v1144 = vadd.f32 %v1043, %v1143
        %1145 = vmatprep.mubr.f32.mxu0 0.0
        %1146 = vmatmul.mubr.f32.gmra.mxu0 %v1061
        %v1147 = vpop.f32.mrf.mxu0
        %v1148 = vadd.f32 %v1048, %v1147
        %v1149 = vpop.f32.mrf.mxu0
        %v1150 = vadd.f32 %v1048, %v1149
        %1151 = vdwg.mxu0
        %v1152 = vmul.f32 %v1130, 0.5
        %v1153 = vmul.f32 %v1132, 0.5
        %v1154 = vmul.f32 %v1136, 0.5
        %v1155 = vmul.f32 %v1138, 0.5
        %v1156 = vmul.f32 %v1142, 0.5
        %v1157 = vmul.f32 %v1144, 0.5
        %v1158 = vmul.f32 %v1148, 0.5
        %v1159 = vmul.f32 %v1150, 0.5
        %v1160 = vmul.f32 %v1130, 0.044715
        %v1161 = vmul.f32 %v1132, 0.044715
        %v1162 = vmul.f32 %v1136, 0.044715
        %v1163 = vmul.f32 %v1138, 0.044715
        %v1164 = vmul.f32 %v1142, 0.044715
        %v1165 = vmul.f32 %v1144, 0.044715
        %v1166 = vmul.f32 %v1148, 0.044715
        %v1167 = vmul.f32 %v1150, 0.044715
        %v1168 = vmul.f32 %v1160, %v1130
        %v1169 = vmul.f32 %v1161, %v1132
        %v1170 = vmul.f32 %v1162, %v1136
        %v1171 = vmul.f32 %v1163, %v1138
        %v1172 = vmul.f32 %v1164, %v1142
        %v1173 = vmul.f32 %v1165, %v1144
        %v1174 = vmul.f32 %v1166, %v1148
        %v1175 = vmul.f32 %v1167, %v1150
        %v1176 = vmul.f32 %v1168, %v1130
        %v1177 = vmul.f32 %v1169, %v1132
        %v1178 = vmul.f32 %v1170, %v1136
        %v1179 = vmul.f32 %v1171, %v1138
        %v1180 = vmul.f32 %v1172, %v1142
        %v1181 = vmul.f32 %v1173, %v1144
        %v1182 = vmul.f32 %v1174, %v1148
        %v1183 = vmul.f32 %v1175, %v1150
        %v1184 = vadd.f32 %v1130, %v1176
        %v1185 = vadd.f32 %v1132, %v1177
        %v1186 = vadd.f32 %v1136, %v1178
        %v1187 = vadd.f32 %v1138, %v1179
        %v1188 = vadd.f32 %v1142, %v1180
        %v1189 = vadd.f32 %v1144, %v1181
        %v1190 = vadd.f32 %v1148, %v1182
        %v1191 = vadd.f32 %v1150, %v1183
        %v1192 = vmul.f32 %v1184, 0.7978846
        %v1193 = vmul.f32 %v1185, 0.7978846
        %v1194 = vmul.f32 %v1186, 0.7978846
        %v1195 = vmul.f32 %v1187, 0.7978846
        %v1196 = vmul.f32 %v1188, 0.7978846
        %v1197 = vmul.f32 %v1189, 0.7978846
        %v1198 = vmul.f32 %v1190, 0.7978846
        %v1199 = vmul.f32 %v1191, 0.7978846
        %v1200 = vtanh.pop %v1192
        %v1201 = vtanh.pop %v1193
        %v1202 = vtanh.pop %v1194
        %v1203 = vtanh.pop %v1195
        %v1204 = vtanh.pop %v1196
        %v1205 = vtanh.pop %v1197
        %v1206 = vtanh.pop %v1198
        %v1207 = vtanh.pop %v1199
        %v1208 = vadd.f32 %v1200, 1.0
        %v1209 = vadd.f32 %v1201, 1.0
        %v1210 = vadd.f32 %v1202, 1.0
        %v1211 = vadd.f32 %v1203, 1.0
        %v1212 = vadd.f32 %v1204, 1.0
        %v1213 = vadd.f32 %v1205, 1.0
        %v1214 = vadd.f32 %v1206, 1.0
        %v1215 = vadd.f32 %v1207, 1.0
        %v1216 = vmul.f32 %v1152, %v1208
        %v1217 = vmul.f32 %v1153, %v1209
        %v1218 = vmul.f32 %v1154, %v1210
        %v1219 = vmul.f32 %v1155, %v1211
        %v1220 = vmul.f32 %v1156, %v1212
        %v1221 = vmul.f32 %v1157, %v1213
        %v1222 = vmul.f32 %v1158, %v1214
        %v1223 = vmul.f32 %v1159, %v1215
        %v1224 = vld [vmem:[%s9] sm:$0xff]
        %v1225 = vld [vmem:[%s9 + $0x8] sm:$0xff]
        %v1226 = vld [vmem:[%s10] sm:$0xff]
        %v1227 = vld [vmem:[%s10 + $0x8] sm:$0xff]
        %1229 = vset.pattern.permute.xlu0 0
        %1230 = vperm.xlu0 %1229, %v1226
        %v1231 = vpop.permute.xlu0 %1230
        %1234 = vset.pattern.permute.xlu0 0
        %1235 = vperm.xlu0 %1234, %v1227
        %v1236 = vpop.permute.xlu0 %1235
        %vm1238 = vcmask 261120
        %v1240 = vsel %vm1238, %v1224, 0
        %v1243 = vsel %vm1238, %v1225, 0
        %1245 = vmatprep.subr.mxu0 0.0
        %1246 = vmatpush1.msra.mxu0 0.0
        %1247 = vmatprep.subr.mxu0 0.0
        %1248 = vmatpush1.msra.mxu0 0.0
        %1249 = vmatprep.subr.mxu0 0.0
        %1250 = vmatpush1.msra.mxu0 0.0
        %1251 = vmatprep.subr.mxu0 0.0
        %1252 = vmatpush1.msra.mxu0 0.0
        %1253 = vmatprep.subr.mxu0 0.0
        %1254 = vmatpush1.msra.mxu0 0.0
        %1255 = vmatprep.subr.mxu0 0.0
        %1256 = vmatpush1.msra.mxu0 0.0
        %1257 = vmatprep.subr.mxu0 0.0
        %1258 = vmatpush1.msra.mxu0 0.0
        %1259 = vmatprep.subr.mxu0 0.0
        %1260 = vmatpush1.msra.mxu0 0.0
        %1261 = vmatprep.subr.mxu0 0.0
        %1262 = vmatpush1.msra.mxu0 0.0
        %1263 = vmatprep.subr.mxu0 0.0
        %1264 = vmatpush1.msra.mxu0 0.0
        %1265 = vmatprep.subr.mxu0 0.0
        %1266 = vmatpush1.msra.mxu0 0.0
        %1267 = vmatprep.subr.mxu0 0.0
        %1268 = vmatpush1.msra.mxu0 0.0
        %1269 = vmatprep.subr.mxu0 %v1223
        %1270 = vmatpush1.msra.mxu0 %v1222
        %1271 = vmatprep.subr.mxu0 %v1221
        %1272 = vmatpush1.msra.mxu0 %v1220
        %1273 = vmatprep.subr.mxu0 %v1219
        %1274 = vmatpush1.msra.mxu0 %v1218
        %1275 = vmatprep.subr.mxu0 %v1217
        %1276 = vmatpush1.msra.mxu0 %v1216
        %1277 = vmatprep.subr.mxu0 0.0
        %1278 = vmatpush2.msra.mxu0 0.0
        %1279 = vmatprep.subr.mxu0 0.0
        %1280 = vmatpush2.msra.mxu0 0.0
        %1281 = vmatprep.subr.mxu0 0.0
        %1282 = vmatpush2.msra.mxu0 0.0
        %1283 = vmatprep.subr.mxu0 0.0
        %1284 = vmatpush2.msra.mxu0 0.0
        %1285 = vmatprep.subr.mxu0 0.0
        %1286 = vmatpush2.msra.mxu0 0.0
        %1287 = vmatprep.subr.mxu0 0.0
        %1288 = vmatpush2.msra.mxu0 0.0
        %1289 = vmatprep.subr.mxu0 0.0
        %1290 = vmatpush2.msra.mxu0 0.0
        %1291 = vmatprep.subr.mxu0 0.0
        %1292 = vmatpush2.msra.mxu0 0.0
        %1293 = vmatprep.subr.mxu0 0.0
        %1294 = vmatpush2.msra.mxu0 0.0
        %1295 = vmatprep.subr.mxu0 0.0
        %1296 = vmatpush2.msra.mxu0 0.0
        %1297 = vmatprep.subr.mxu0 0.0
        %1298 = vmatpush2.msra.mxu0 0.0
        %1299 = vmatprep.subr.mxu0 0.0
        %1300 = vmatpush2.msra.mxu0 0.0
        %1301 = vmatprep.subr.mxu0 0.0
        %1302 = vmatpush2.msra.mxu0 0.0
        %1303 = vmatprep.subr.mxu0 0.0
        %1304 = vmatpush2.msra.mxu0 0.0
        %1305 = vmatprep.subr.mxu0 0.0
        %1306 = vmatpush2.msra.mxu0 0.0
        %1307 = vmatprep.subr.mxu0 0.0
        %1308 = vmatpush2.msra.mxu0 0.0
        %1309 = vmatprep.mubr.f32.mxu0 0.0
        %1310 = vmatmul.mubr.f32.gmra.mxu0 %v1240
        %v1311 = vpop.f32.mrf.mxu0
        %v1312 = vadd.f32 %v1231, %v1311
        %v1313 = vpop.f32.mrf.mxu0
        %v1314 = vadd.f32 %v1231, %v1313
        %1315 = vmatprep.mubr.f32.mxu0 0.0
        %1316 = vmatmul.mubr.f32.gmra.mxu0 %v1243
        %v1317 = vpop.f32.mrf.mxu0
        %v1318 = vadd.f32 %v1236, %v1317
        %v1319 = vpop.f32.mrf.mxu0
        %v1320 = vadd.f32 %v1236, %v1319
        %1321 = vdwg.mxu0
        %v1322 = vadd.f32 %v1312, %v486
        %v1323 = vadd.f32 %v1314, %v487
        %v1324 = vadd.f32 %v1318, %v488
        %v1325 = vadd.f32 %v1320, %v489
        %1326 = vst [vmem:[%s455] sm:$0xff] %v1322
        %1327 = vst [vmem:[%s455 + $0x8] sm:$0xff] %v1323
        %1328 = vst [vmem:[%s455 + $0x10] sm:$0xff] %v1324
        %1329 = vst [vmem:[%s455 + $0x18] sm:$0xff] %v1325
        %s1330 = sand.u32 %s299, 1
        %s1331 = scalar_lea.sflag [#allocation3], %s1330
        %s1332 = sand.u32 %s299, 1
        %s1333 = smul.addr %s1332, 32
        %s1334 = scalar_lea.vmem [#allocation2], %s1333
        // Predicated region
        $region65: #{tpu_custom_call.1} parent=63 // pred_check
          %p1335 = pneg %p309
        $region66: #{tpu_custom_call.1} parent=63 // pred_check_branch
          %1337 = sbr.rel (%p1335) target = $region68
        $region67: #{tpu_custom_call.1} parent=63 // pred_region
          %s1338 = smul.u32 2, %s30
          %s1340 = ssub.s32 512, 512
          %1341 = vsyncadd %s1331, %s1340
          %s1342 = smul.addr %s29, 4
          %s1343 = sadd.s32 %s1338, %s1342
          %s1344 = smul.addr %s1343, 128
          %s1345 = scalar_lea.hbm %s11, %s1344
          %s1346 = sshll.u32 %s1334, 4
          %s1347 = int_to_ptr.vmem [resolvable:$true] %s1346
          %1352 = dma.vmem_to_hbm [thread:$0]  %s1347, 512, %s1345, %s1331, 256, 256, 16
        $region68: #{tpu_custom_call.1} parent=63 // pred_fallthru
          _
      $region64: #{tpu_custom_call.1} parent=5 // pred_fallthru
        _
      %p1353 = scmp.le.s32.totalorder 2, %s20
      // Predicated region
      $region69: #{tpu_custom_call.1} parent=5 // pred_check
        %p1354 = pneg %p1353
      $region70: #{tpu_custom_call.1} parent=5 // pred_check_branch
        %1356 = sbr.rel (%p1354) target = $region72
      $region71: #{tpu_custom_call.1} parent=5 // pred_region
        %s1357 = ssub.s32 %s20, 2
        // Predicated region
        $region73: #{tpu_custom_call.1} parent=71 // pred_check
          %p1358 = pneg %p315
        $region74: #{tpu_custom_call.1} parent=71 // pred_check_branch
          %1360 = sbr.rel (%p1358) target = $region76
        $region75: #{tpu_custom_call.1} parent=71 // pred_region
          %s1361 = sand.u32 %s300, 1
          %s1362 = scalar_lea.sflag [#allocation3], %s1361
          %s1363 = sand.u32 %s300, 1
          %s1364 = smul.addr %s1363, 32
          %s1365 = scalar_lea.vmem [#allocation2], %s1364
          %1366 = dma.done %s1362, 512
        $region76: #{tpu_custom_call.1} parent=71 // pred_fallthru
          _
      $region72: #{tpu_custom_call.1} parent=5 // pred_fallthru
        _
    $region6: #{tpu_custom_call.1} parent=1 // loop_footer
      %s24 = sadd.s32 1, %s20
    $region7: #{tpu_custom_call.1} parent=1 // loop_footer_branch
      %19 = sbr.rel target = $region3
    $region8: #{tpu_custom_call.1} parent=1 // loop_exit
      _
    %1367 = vsyncpa [#allocation3], 1
    %s1368 = scalar_lea.sflag [#allocation3], 1
    %1369 = vsyncpa %s1368, 1

</llo_original>
